<compile_context>
chip_gen: v6e
topology: v6e:2x2x1
jax: 0.10.0
libtpu: 0.0.40
codegen_flags: <defaults>
</compile_context>

<pallas_src>
import functools
import math

import jax
import jax.numpy as jnp
from jax.experimental import pallas as pl
from jax.experimental.pallas import tpu as pltpu

# ---- model hyper-parameters ----
D_MODEL = 32
NHEAD = 4
HEAD_DIM = D_MODEL // NHEAD
LN_EPS = 1e-5


def _self_attn_layer_kernel(tgt_ref, pos_ref, mask_ref, w_ref, vec_ref, out_ref,
                            *, tb, seq_len, mxu_dtype):
    """One grid step = `tb` batch elements, flattened to M = tb*seq_len rows.

    tgt_ref/pos_ref/out_ref : (M, E) f32
    mask_ref : (M, M) f32 block-diagonal bias (0 on per-batch LxL blocks,
               -1e30 elsewhere); unused when tb == 1.
    w_ref    : (E, 4E) = [Wq^T*scale | Wk^T | Wv^T | Wo^T]
    vec_ref  : (8, 2E) row0=[bq*scale | bk], row1=[bv | bo], row2=[gamma | beta]
    """
    E, HD = D_MODEL, HEAD_DIM
    M = tb * seq_len

    def mx(a):  # optional low-precision cast for MXU operands only (v6e/v7x)
        return a if mxu_dtype is None else a.astype(mxu_dtype)

    # ---- hoisted loads (each ref slice read exactly once) ----
    x = tgt_ref[...]                               # (M, E) f32
    qk_in = x + pos_ref[...]                       # q = k input = tgt + query_pos
    w_qk = w_ref[:, :2 * E]                        # (E, 2E)
    w_v = w_ref[:, 2 * E:3 * E]                    # (E, E)
    w_o = w_ref[:, 3 * E:]                         # (E, E)
    b_qk = vec_ref[0:1, :]                         # (1, 2E)
    b_v = vec_ref[1:2, :E]
    b_o = vec_ref[1:2, E:]
    gamma = vec_ref[2:3, :E]
    beta = vec_ref[2:3, E:]
    mask_bias = mask_ref[...] if tb > 1 else None  # hoisted out of head loop

    # ---- fused projections (scale pre-folded into Wq/bq) ----
    qk = jnp.dot(mx(qk_in), mx(w_qk),
                 preferred_element_type=jnp.float32) + b_qk          # (M, 2E)
    v = jnp.dot(mx(x), mx(w_v),
                preferred_element_type=jnp.float32) + b_v            # (M, E)

    # ---- per-head block-diagonal attention over the whole row slab ----
    head_outs = []
    for h in range(NHEAD):
        hs = slice(h * HD, (h + 1) * HD)
        qh = qk[:, hs]                                               # (M, HD)
        kh = qk[:, E + h * HD:E + (h + 1) * HD]                      # (M, HD)
        vh = v[:, hs]                                                # (M, HD)
        s = jax.lax.dot_general(mx(qh), mx(kh), (((1,), (1,)), ((), ())),
                                preferred_element_type=jnp.float32)  # (M, M)
        if mask_bias is not None:
            s = s + mask_bias
        s = s - jnp.max(s, axis=-1, keepdims=True)
        p = jnp.exp(s)
        inv_l = pl.reciprocal(jnp.sum(p, axis=-1, keepdims=True),
                              approx=False)                          # exact
        head = jnp.dot(mx(p), mx(vh),
                       preferred_element_type=jnp.float32)           # (M, HD)
        head_outs.append(head * inv_l)       # normalize after P@V (cheaper)
    o_heads = jnp.concatenate(head_outs, axis=-1)                    # (M, E)

    # ---- single output projection + residual + LayerNorm (f32) ----
    attn = jnp.dot(mx(o_heads), mx(w_o),
                   preferred_element_type=jnp.float32) + b_o         # (M, E)
    y = x + attn
    mean = jnp.mean(y, axis=-1, keepdims=True)
    yc = y - mean
    var = jnp.mean(yc * yc, axis=-1, keepdims=True)
    out = yc * jax.lax.rsqrt(var + LN_EPS) * gamma + beta
    out_ref[...] = out.astype(out_ref.dtype)


def _tpu_has_two_tensorcores():
    """v7x has 2 TensorCores per chip; v5e/v6e have 1 (grid is a serial loop)."""
    try:
        dev = jax.devices()[0]
        return dev.platform == "tpu" and "v7" in str(dev.device_kind).lower()
    except Exception:
        return False


def _pick_block_batch(B, L, *, rows_target=512, split_for_two_cores=False):
    """Smallest divisor of B giving >= rows_target flattened rows per step
    (amortizes the ~0.35us per-step overhead), falling back to the whole batch.
    Tile row count must satisfy the (8,128) rule ((tb*L)%8==0 or tb==B).
    Only on v7x do we prefer >=2 grid steps so both TensorCores get work."""
    divs = [d for d in range(1, B + 1)
            if B % d == 0 and ((d * L) % 8 == 0 or d == B)]
    meets = [d for d in divs if d * L >= rows_target]
    tb = meets[0] if meets else divs[-1]
    if split_for_two_cores and B >= 2 and B // tb < 2:
        two_step = [d for d in divs if B // d >= 2]
        if two_step:
            tb = two_step[-1]
    return tb


def _block_diag_bias(tb, L):
    """(tb*L, tb*L) additive bias: 0 on per-batch LxL blocks, -1e30 elsewhere.
    Built once in the wrapper (hoisted out of the kernel body)."""
    ids = jnp.repeat(jnp.arange(tb, dtype=jnp.int32), L)
    same = ids[:, None] == ids[None, :]
    return jnp.where(same, jnp.float32(0.0), jnp.float32(-1e30))


def self_attention_layer(tgt, query_pos, packed, *, block_batch=None,
                         mxu_dtype=None):
    """tgt, query_pos: (B, L, E) float32. `packed` from pack_params().
    mxu_dtype=jnp.bfloat16 casts MXU operands only (recommended on v6e/v7x for
    inference); softmax/LayerNorm always stay f32."""
    B, L, E = tgt.shape
    assert E == D_MODEL
    if block_batch is not None:
        tb = block_batch
    else:
        tb = _pick_block_batch(B, L,
                               split_for_two_cores=_tpu_has_two_tensorcores())
    assert B % tb == 0 and ((tb * L) % 8 == 0 or tb == B)
    n_steps = B // tb
    M = tb * L

    tgt2d = tgt.reshape(B * L, E)
    pos2d = query_pos.reshape(B * L, E)
    mask = _block_diag_bias(tb, L)

    seq_spec = pl.BlockSpec((M, E), lambda i: (i, 0))
    mask_spec = pl.BlockSpec((M, M), lambda i: (0, 0))
    w_spec = pl.BlockSpec((E, 4 * E), lambda i: (0, 0))
    vec_spec = pl.BlockSpec((8, 2 * E), lambda i: (0, 0))

    # Advisory cost estimate so XLA can schedule the surrounding graph.
    flops = (2 * B * L * E * (2 * E)                      # QK projection
             + 2 * B * L * E * E                          # V projection
             + 4 * n_steps * NHEAD * M * M * HEAD_DIM     # S and P@V
             + 2 * B * L * E * E)                         # output projection
    transcendentals = n_steps * NHEAD * (M * M + M) + B * L
    bytes_accessed = 4 * (3 * B * L * E + M * M + E * 4 * E + 8 * 2 * E)

    kernel = functools.partial(_self_attn_layer_kernel,
                               tb=tb, seq_len=L, mxu_dtype=mxu_dtype)
    out2d = pl.pallas_call(
        kernel,
        out_shape=jax.ShapeDtypeStruct((B * L, E), tgt.dtype),
        grid=(n_steps,),
        in_specs=[seq_spec, seq_spec, mask_spec, w_spec, vec_spec],
        out_specs=seq_spec,
        compiler_params=pltpu.CompilerParams(
            dimension_semantics=("parallel",)),
        cost_estimate=pl.CostEstimate(flops=flops,
                                      transcendentals=transcendentals,
                                      bytes_accessed=bytes_accessed),
    )(tgt2d, pos2d, mask, packed["wslab"], packed["vslab"])
    return out2d.reshape(B, L, E)


# ---------------- parameter construction / packing ----------------
def _xavier_uniform(key, shape):
    fan_out, fan_in = shape
    limit = math.sqrt(6.0 / (fan_in + fan_out))
    return jax.random.uniform(key, shape, jnp.float32, -limit, limit)


def make_params(key):
    k_in, k_out = jax.random.split(key)
    in_proj = _xavier_uniform(k_in, (3 * D_MODEL, D_MODEL))
    wq, wk, wv = jnp.split(in_proj, 3, axis=0)        # each (E, E), used as x @ W^T
    wo = _xavier_uniform(k_out, (D_MODEL, D_MODEL))
    zeros = jnp.zeros((1, D_MODEL), jnp.float32)
    return dict(
        wq_t=wq.T, wk_t=wk.T, wv_t=wv.T,
        bq=zeros, bk=zeros, bv=zeros,                 # MHA biases are zero-init
        wo_t=wo.T, bo=zeros,
        gamma=jnp.ones((1, D_MODEL), jnp.float32),    # LayerNorm affine
        beta=zeros,
    )


def pack_params(p):
    """Fold 1/sqrt(head_dim) into Wq/bq and pack everything into 2 slabs."""
    E = D_MODEL
    scale = 1.0 / math.sqrt(HEAD_DIM)
    wslab = jnp.concatenate(
        [p["wq_t"] * scale, p["wk_t"], p["wv_t"], p["wo_t"]], axis=1)   # (E, 4E)
    row0 = jnp.concatenate([p["bq"] * scale, p["bk"]], axis=1)          # (1, 2E)
    row1 = jnp.concatenate([p["bv"], p["bo"]], axis=1)
    row2 = jnp.concatenate([p["gamma"], p["beta"]], axis=1)
    vslab = jnp.concatenate(
        [row0, row1, row2, jnp.zeros((5, 2 * E), jnp.float32)], axis=0)  # (8, 2E)
    return dict(wslab=wslab, vslab=vslab)


# ---------------- pure-JAX reference for validation ----------------
def reference(tgt, pos, params):
    B, L, E = tgt.shape
    qk = tgt + pos
    q = qk @ params["wq_t"] + params["bq"]
    k = qk @ params["wk_t"] + params["bk"]
    v = tgt @ params["wv_t"] + params["bv"]
    qh = q.reshape(B, L, NHEAD, HEAD_DIM)
    kh = k.reshape(B, L, NHEAD, HEAD_DIM)
    vh = v.reshape(B, L, NHEAD, HEAD_DIM)
    scores = jnp.einsum("blhd,bmhd->bhlm", qh, kh) / math.sqrt(HEAD_DIM)
    p = jax.nn.softmax(scores, axis=-1)
    o = jnp.einsum("bhlm,bmhd->blhd", p, vh).reshape(B, L, E)
    proj = o @ params["wo_t"] + params["bo"]
    y = tgt + proj
    mean = jnp.mean(y, axis=-1, keepdims=True)
    var = jnp.mean((y - mean) ** 2, axis=-1, keepdims=True)
    return (y - mean) / jnp.sqrt(var + LN_EPS) * params["gamma"] + params["beta"]


if __name__ == "__main__":
    key = jax.random.PRNGKey(0)
    k_tgt, k_pos, k_par = jax.random.split(key, 3)
    params = make_params(k_par)
    packed = pack_params(params)

    def run_case(B, L, **kw):
        tgt = jax.random.normal(jax.random.fold_in(k_tgt, B * 131 + L),
                                (B, L, D_MODEL), jnp.float32)
        pos = jax.random.normal(jax.random.fold_in(k_pos, B * 131 + L),
                                (B, L, D_MODEL), jnp.float32)
        out = jax.block_until_ready(self_attention_layer(tgt, pos, packed, **kw))
        ref = reference(tgt, pos, params)
        assert out.shape == ref.shape
        return out, ref

    # Exact-f32 MXU path: default single-step tiles, a forced 2-step grid
    # (exercises the block-diagonal mask across grid iterations), and tb==1
    # (mask-free path).
    for B, L, kw in [(2, 8, {}), (4, 8, {}),
                     (4, 8, dict(block_batch=2)),
                     (2, 8, dict(block_batch=1))]:
        out, ref = run_case(B, L, **kw)
        assert jnp.allclose(out, ref, atol=2e-3, rtol=2e-3), \
            f"mismatch vs reference (f32 path) B={B} L={L} {kw}"

    # bf16 MXU operands (recommended default on v6e/v7x for inference).
    out, ref = run_case(4, 8, mxu_dtype=jnp.bfloat16)
    assert jnp.allclose(out, ref, atol=5e-2, rtol=5e-2), \
        "mismatch vs reference (bf16 MXU path)"

    print("KERNEL_OK")
</pallas_src>

<mosaic_0001>
module attributes {stable_mosaic.version = 11 : i64} {
  func.func @_self_attn_layer_kernel(%arg0: i32, %arg1: memref<16x32xf32, #tpu.memory_space<vmem>>, %arg2: memref<16x32xf32, #tpu.memory_space<vmem>>, %arg3: memref<16x16xf32, #tpu.memory_space<vmem>>, %arg4: memref<32x128xf32, #tpu.memory_space<vmem>>, %arg5: memref<8x64xf32, #tpu.memory_space<vmem>>, %arg6: memref<16x32xf32, #tpu.memory_space<vmem>>) attributes {dimension_semantics = [#tpu.dimension_semantics<parallel>], iteration_bounds = array<i64: 1>, scalar_prefetch = 0 : i64, scratch_operands = 0 : i64, tpu.core_type = #tpu.core_type<tc>, window_params = [{transform_indices = @transform_0, window_bounds = array<i64: 16, 32>}, {transform_indices = @transform_1, window_bounds = array<i64: 16, 32>}, {pipeline_mode = #tpu.pipeline_mode<synchronous>, transform_indices = @transform_2, window_bounds = array<i64: 16, 16>}, {pipeline_mode = #tpu.pipeline_mode<synchronous>, transform_indices = @transform_3, window_bounds = array<i64: 32, 128>}, {pipeline_mode = #tpu.pipeline_mode<synchronous>, transform_indices = @transform_4, window_bounds = array<i64: 8, 64>}, {transform_indices = @transform_5, window_bounds = array<i64: 16, 32>}]} {
    %c0 = arith.constant 0 : index
    %c0_0 = arith.constant 0 : index
    %0 = vector.load %arg1[%c0, %c0_0] : memref<16x32xf32, #tpu.memory_space<vmem>>, vector<16x32xf32>
    %c0_1 = arith.constant 0 : index
    %c0_2 = arith.constant 0 : index
    %1 = vector.load %arg2[%c0_1, %c0_2] : memref<16x32xf32, #tpu.memory_space<vmem>>, vector<16x32xf32>
    %2 = arith.addf %0, %1 : vector<16x32xf32>
    %c0_3 = arith.constant 0 : index
    %c0_4 = arith.constant 0 : index
    %3 = vector.load %arg4[%c0_3, %c0_4] : memref<32x128xf32, #tpu.memory_space<vmem>>, vector<32x64xf32>
    %c0_5 = arith.constant 0 : index
    %c64 = arith.constant 64 : index
    %4 = vector.load %arg4[%c0_5, %c64] : memref<32x128xf32, #tpu.memory_space<vmem>>, vector<32x32xf32>
    %c0_6 = arith.constant 0 : index
    %c96 = arith.constant 96 : index
    %5 = vector.load %arg4[%c0_6, %c96] : memref<32x128xf32, #tpu.memory_space<vmem>>, vector<32x32xf32>
    %c0_7 = arith.constant 0 : index
    %c0_8 = arith.constant 0 : index
    %6 = vector.load %arg5[%c0_7, %c0_8] : memref<8x64xf32, #tpu.memory_space<vmem>>, vector<1x64xf32>
    %c1 = arith.constant 1 : index
    %c0_9 = arith.constant 0 : index
    %7 = vector.load %arg5[%c1, %c0_9] : memref<8x64xf32, #tpu.memory_space<vmem>>, vector<1x32xf32>
    %c1_10 = arith.constant 1 : index
    %c32 = arith.constant 32 : index
    %8 = vector.load %arg5[%c1_10, %c32] : memref<8x64xf32, #tpu.memory_space<vmem>>, vector<1x32xf32>
    %c2 = arith.constant 2 : index
    %c0_11 = arith.constant 0 : index
    %9 = vector.load %arg5[%c2, %c0_11] : memref<8x64xf32, #tpu.memory_space<vmem>>, vector<1x32xf32>
    %c2_12 = arith.constant 2 : index
    %c32_13 = arith.constant 32 : index
    %10 = vector.load %arg5[%c2_12, %c32_13] : memref<8x64xf32, #tpu.memory_space<vmem>>, vector<1x32xf32>
    %c0_14 = arith.constant 0 : index
    %c0_15 = arith.constant 0 : index
    %11 = vector.load %arg3[%c0_14, %c0_15] : memref<16x16xf32, #tpu.memory_space<vmem>>, vector<16x16xf32>
    %cst = arith.constant dense<0.000000e+00> : vector<16x64xf32>
    %12 = tpu.matmul %2, %3, %cst {dimension_numbers = #tpu.dot_dimension_numbers<[1], [0], [0], [1], [0, 0, 1, 1], [], []>} : vector<16x32xf32>, vector<32x64xf32>, vector<16x64xf32> -> vector<16x64xf32>
    %13 = vector.broadcast %6 : vector<1x64xf32> to vector<16x64xf32>
    %14 = arith.addf %12, %13 : vector<16x64xf32>
    %cst_16 = arith.constant dense<0.000000e+00> : vector<16x32xf32>
    %15 = tpu.matmul %0, %4, %cst_16 {dimension_numbers = #tpu.dot_dimension_numbers<[1], [0], [0], [1], [0, 0, 1, 1], [], []>} : vector<16x32xf32>, vector<32x32xf32>, vector<16x32xf32> -> vector<16x32xf32>
    %16 = vector.broadcast %7 : vector<1x32xf32> to vector<16x32xf32>
    %17 = arith.addf %15, %16 : vector<16x32xf32>
    %18 = vector.extract_strided_slice %14 {offsets = [0, 0], sizes = [16, 8], strides = [1, 1]} : vector<16x64xf32> to vector<16x8xf32>
    %19 = vector.extract_strided_slice %14 {offsets = [0, 32], sizes = [16, 8], strides = [1, 1]} : vector<16x64xf32> to vector<16x8xf32>
    %20 = vector.extract_strided_slice %17 {offsets = [0, 0], sizes = [16, 8], strides = [1, 1]} : vector<16x32xf32> to vector<16x8xf32>
    %cst_17 = arith.constant dense<0.000000e+00> : vector<16x16xf32>
    %21 = tpu.matmul %18, %19, %cst_17 {dimension_numbers = #tpu.dot_dimension_numbers<[1], [1], [0], [0], [0, 0, 1, 0], [], []>} : vector<16x8xf32>, vector<16x8xf32>, vector<16x16xf32> -> vector<16x16xf32>
    %22 = arith.addf %21, %11 : vector<16x16xf32>
    %cst_18 = arith.constant dense<0xFF800000> : vector<16xf32>
    %23 = vector.multi_reduction <maximumf>, %22, %cst_18 [1] : vector<16x16xf32> to vector<16xf32>
    %24 = vector.shape_cast %23 : vector<16xf32> to vector<16x1xf32>
    %25 = vector.broadcast %24 : vector<16x1xf32> to vector<16x16xf32>
    %26 = arith.subf %22, %25 : vector<16x16xf32>
    %27 = math.exp %26 : vector<16x16xf32>
    %cst_19 = arith.constant dense<0.000000e+00> : vector<16xf32>
    %28 = vector.multi_reduction <add>, %27, %cst_19 [1] : vector<16x16xf32> to vector<16xf32>
    %29 = vector.shape_cast %28 : vector<16xf32> to vector<16x1xf32>
    %30 = tpu.reciprocal %29 : vector<16x1xf32> -> vector<16x1xf32>
    %cst_20 = arith.constant dense<0.000000e+00> : vector<16x8xf32>
    %31 = tpu.matmul %27, %20, %cst_20 {dimension_numbers = #tpu.dot_dimension_numbers<[1], [0], [0], [1], [0, 0, 1, 1], [], []>} : vector<16x16xf32>, vector<16x8xf32>, vector<16x8xf32> -> vector<16x8xf32>
    %32 = vector.broadcast %30 : vector<16x1xf32> to vector<16x8xf32>
    %33 = arith.mulf %31, %32 : vector<16x8xf32>
    %34 = vector.extract_strided_slice %14 {offsets = [0, 8], sizes = [16, 8], strides = [1, 1]} : vector<16x64xf32> to vector<16x8xf32>
    %35 = vector.extract_strided_slice %14 {offsets = [0, 40], sizes = [16, 8], strides = [1, 1]} : vector<16x64xf32> to vector<16x8xf32>
    %36 = vector.extract_strided_slice %17 {offsets = [0, 8], sizes = [16, 8], strides = [1, 1]} : vector<16x32xf32> to vector<16x8xf32>
    %cst_21 = arith.constant dense<0.000000e+00> : vector<16x16xf32>
    %37 = tpu.matmul %34, %35, %cst_21 {dimension_numbers = #tpu.dot_dimension_numbers<[1], [1], [0], [0], [0, 0, 1, 0], [], []>} : vector<16x8xf32>, vector<16x8xf32>, vector<16x16xf32> -> vector<16x16xf32>
    %38 = arith.addf %37, %11 : vector<16x16xf32>
    %cst_22 = arith.constant dense<0xFF800000> : vector<16xf32>
    %39 = vector.multi_reduction <maximumf>, %38, %cst_22 [1] : vector<16x16xf32> to vector<16xf32>
    %40 = vector.shape_cast %39 : vector<16xf32> to vector<16x1xf32>
    %41 = vector.broadcast %40 : vector<16x1xf32> to vector<16x16xf32>
    %42 = arith.subf %38, %41 : vector<16x16xf32>
    %43 = math.exp %42 : vector<16x16xf32>
    %cst_23 = arith.constant dense<0.000000e+00> : vector<16xf32>
    %44 = vector.multi_reduction <add>, %43, %cst_23 [1] : vector<16x16xf32> to vector<16xf32>
    %45 = vector.shape_cast %44 : vector<16xf32> to vector<16x1xf32>
    %46 = tpu.reciprocal %45 : vector<16x1xf32> -> vector<16x1xf32>
    %cst_24 = arith.constant dense<0.000000e+00> : vector<16x8xf32>
    %47 = tpu.matmul %43, %36, %cst_24 {dimension_numbers = #tpu.dot_dimension_numbers<[1], [0], [0], [1], [0, 0, 1, 1], [], []>} : vector<16x16xf32>, vector<16x8xf32>, vector<16x8xf32> -> vector<16x8xf32>
    %48 = vector.broadcast %46 : vector<16x1xf32> to vector<16x8xf32>
    %49 = arith.mulf %47, %48 : vector<16x8xf32>
    %50 = vector.extract_strided_slice %14 {offsets = [0, 16], sizes = [16, 8], strides = [1, 1]} : vector<16x64xf32> to vector<16x8xf32>
    %51 = vector.extract_strided_slice %14 {offsets = [0, 48], sizes = [16, 8], strides = [1, 1]} : vector<16x64xf32> to vector<16x8xf32>
    %52 = vector.extract_strided_slice %17 {offsets = [0, 16], sizes = [16, 8], strides = [1, 1]} : vector<16x32xf32> to vector<16x8xf32>
    %cst_25 = arith.constant dense<0.000000e+00> : vector<16x16xf32>
    %53 = tpu.matmul %50, %51, %cst_25 {dimension_numbers = #tpu.dot_dimension_numbers<[1], [1], [0], [0], [0, 0, 1, 0], [], []>} : vector<16x8xf32>, vector<16x8xf32>, vector<16x16xf32> -> vector<16x16xf32>
    %54 = arith.addf %53, %11 : vector<16x16xf32>
    %cst_26 = arith.constant dense<0xFF800000> : vector<16xf32>
    %55 = vector.multi_reduction <maximumf>, %54, %cst_26 [1] : vector<16x16xf32> to vector<16xf32>
    %56 = vector.shape_cast %55 : vector<16xf32> to vector<16x1xf32>
    %57 = vector.broadcast %56 : vector<16x1xf32> to vector<16x16xf32>
    %58 = arith.subf %54, %57 : vector<16x16xf32>
    %59 = math.exp %58 : vector<16x16xf32>
    %cst_27 = arith.constant dense<0.000000e+00> : vector<16xf32>
    %60 = vector.multi_reduction <add>, %59, %cst_27 [1] : vector<16x16xf32> to vector<16xf32>
    %61 = vector.shape_cast %60 : vector<16xf32> to vector<16x1xf32>
    %62 = tpu.reciprocal %61 : vector<16x1xf32> -> vector<16x1xf32>
    %cst_28 = arith.constant dense<0.000000e+00> : vector<16x8xf32>
    %63 = tpu.matmul %59, %52, %cst_28 {dimension_numbers = #tpu.dot_dimension_numbers<[1], [0], [0], [1], [0, 0, 1, 1], [], []>} : vector<16x16xf32>, vector<16x8xf32>, vector<16x8xf32> -> vector<16x8xf32>
    %64 = vector.broadcast %62 : vector<16x1xf32> to vector<16x8xf32>
    %65 = arith.mulf %63, %64 : vector<16x8xf32>
    %66 = vector.extract_strided_slice %14 {offsets = [0, 24], sizes = [16, 8], strides = [1, 1]} : vector<16x64xf32> to vector<16x8xf32>
    %67 = vector.extract_strided_slice %14 {offsets = [0, 56], sizes = [16, 8], strides = [1, 1]} : vector<16x64xf32> to vector<16x8xf32>
    %68 = vector.extract_strided_slice %17 {offsets = [0, 24], sizes = [16, 8], strides = [1, 1]} : vector<16x32xf32> to vector<16x8xf32>
    %cst_29 = arith.constant dense<0.000000e+00> : vector<16x16xf32>
    %69 = tpu.matmul %66, %67, %cst_29 {dimension_numbers = #tpu.dot_dimension_numbers<[1], [1], [0], [0], [0, 0, 1, 0], [], []>} : vector<16x8xf32>, vector<16x8xf32>, vector<16x16xf32> -> vector<16x16xf32>
    %70 = arith.addf %69, %11 : vector<16x16xf32>
    %cst_30 = arith.constant dense<0xFF800000> : vector<16xf32>
    %71 = vector.multi_reduction <maximumf>, %70, %cst_30 [1] : vector<16x16xf32> to vector<16xf32>
    %72 = vector.shape_cast %71 : vector<16xf32> to vector<16x1xf32>
    %73 = vector.broadcast %72 : vector<16x1xf32> to vector<16x16xf32>
    %74 = arith.subf %70, %73 : vector<16x16xf32>
    %75 = math.exp %74 : vector<16x16xf32>
    %cst_31 = arith.constant dense<0.000000e+00> : vector<16xf32>
    %76 = vector.multi_reduction <add>, %75, %cst_31 [1] : vector<16x16xf32> to vector<16xf32>
    %77 = vector.shape_cast %76 : vector<16xf32> to vector<16x1xf32>
    %78 = tpu.reciprocal %77 : vector<16x1xf32> -> vector<16x1xf32>
    %cst_32 = arith.constant dense<0.000000e+00> : vector<16x8xf32>
    %79 = tpu.matmul %75, %68, %cst_32 {dimension_numbers = #tpu.dot_dimension_numbers<[1], [0], [0], [1], [0, 0, 1, 1], [], []>} : vector<16x16xf32>, vector<16x8xf32>, vector<16x8xf32> -> vector<16x8xf32>
    %80 = vector.broadcast %78 : vector<16x1xf32> to vector<16x8xf32>
    %81 = arith.mulf %79, %80 : vector<16x8xf32>
    %82 = tpu.concatenate %33, %49, %65, %81 in 1 : vector<16x8xf32>, vector<16x8xf32>, vector<16x8xf32>, vector<16x8xf32> -> vector<16x32xf32>
    %cst_33 = arith.constant dense<0.000000e+00> : vector<16x32xf32>
    %83 = tpu.matmul %82, %5, %cst_33 {dimension_numbers = #tpu.dot_dimension_numbers<[1], [0], [0], [1], [0, 0, 1, 1], [], []>} : vector<16x32xf32>, vector<32x32xf32>, vector<16x32xf32> -> vector<16x32xf32>
    %84 = vector.broadcast %8 : vector<1x32xf32> to vector<16x32xf32>
    %85 = arith.addf %83, %84 : vector<16x32xf32>
    %86 = arith.addf %0, %85 : vector<16x32xf32>
    %cst_34 = arith.constant dense<0.000000e+00> : vector<16xf32>
    %87 = vector.multi_reduction <add>, %86, %cst_34 [1] : vector<16x32xf32> to vector<16xf32>
    %88 = vector.shape_cast %87 : vector<16xf32> to vector<16x1xf32>
    %cst_35 = arith.constant 3.200000e+01 : f32
    %89 = vector.broadcast %cst_35 : f32 to vector<16x1xf32>
    %90 = arith.divf %88, %89 : vector<16x1xf32>
    %91 = vector.broadcast %90 : vector<16x1xf32> to vector<16x32xf32>
    %92 = arith.subf %86, %91 : vector<16x32xf32>
    %93 = arith.mulf %92, %92 : vector<16x32xf32>
    %cst_36 = arith.constant dense<0.000000e+00> : vector<16xf32>
    %94 = vector.multi_reduction <add>, %93, %cst_36 [1] : vector<16x32xf32> to vector<16xf32>
    %95 = vector.shape_cast %94 : vector<16xf32> to vector<16x1xf32>
    %cst_37 = arith.constant 3.200000e+01 : f32
    %96 = vector.broadcast %cst_37 : f32 to vector<16x1xf32>
    %97 = arith.divf %95, %96 : vector<16x1xf32>
    %cst_38 = arith.constant 9.99999974E-6 : f32
    %98 = vector.broadcast %cst_38 : f32 to vector<16x1xf32>
    %99 = arith.addf %97, %98 : vector<16x1xf32>
    %100 = math.rsqrt %99 : vector<16x1xf32>
    %101 = vector.broadcast %100 : vector<16x1xf32> to vector<16x32xf32>
    %102 = arith.mulf %92, %101 : vector<16x32xf32>
    %103 = vector.broadcast %9 : vector<1x32xf32> to vector<16x32xf32>
    %104 = arith.mulf %102, %103 : vector<16x32xf32>
    %105 = vector.broadcast %10 : vector<1x32xf32> to vector<16x32xf32>
    %106 = arith.addf %104, %105 : vector<16x32xf32>
    %c0_39 = arith.constant 0 : index
    %c0_40 = arith.constant 0 : index
    %107 = vector.load %arg6[%c0_39, %c0_40] : memref<16x32xf32, #tpu.memory_space<vmem>>, vector<16x32xf32>
    tpu.vector_store %arg6[%c0_39, %c0_40], %106 {strides = array<i32>} : memref<16x32xf32, #tpu.memory_space<vmem>>, vector<16x32xf32>,
    return
  }
  func.func @transform_0(%arg0: i32) -> (i32, i32) {
    %c0_i32 = arith.constant 0 : i32
    %c0_i32_0 = arith.constant 0 : i32
    return %arg0, %c0_i32 : i32, i32
  }
  func.func @transform_1(%arg0: i32) -> (i32, i32) {
    %c0_i32 = arith.constant 0 : i32
    %c0_i32_0 = arith.constant 0 : i32
    return %arg0, %c0_i32 : i32, i32
  }
  func.func @transform_2(%arg0: i32) -> (i32, i32) {
    %c0_i32 = arith.constant 0 : i32
    %c0_i32_0 = arith.constant 0 : i32
    %c0_i32_1 = arith.constant 0 : i32
    return %c0_i32, %c0_i32_0 : i32, i32
  }
  func.func @transform_3(%arg0: i32) -> (i32, i32) {
    %c0_i32 = arith.constant 0 : i32
    %c0_i32_0 = arith.constant 0 : i32
    %c0_i32_1 = arith.constant 0 : i32
    return %c0_i32, %c0_i32_0 : i32, i32
  }
  func.func @transform_4(%arg0: i32) -> (i32, i32) {
    %c0_i32 = arith.constant 0 : i32
    %c0_i32_0 = arith.constant 0 : i32
    %c0_i32_1 = arith.constant 0 : i32
    return %c0_i32, %c0_i32_0 : i32, i32
  }
  func.func @transform_5(%arg0: i32) -> (i32, i32) {
    %c0_i32 = arith.constant 0 : i32
    %c0_i32_0 = arith.constant 0 : i32
    return %arg0, %c0_i32 : i32, i32
  }
}

</mosaic_0001>

<llo_original>
// kernel: tpu_custom_call.1
$region0: #{tpu_custom_call.1}
  #allocation0 [shape = 'u32[]', space=smem, size = 0x4, offset = 0x4, fixed_abs, tag = 'smem constant byte address 0x4 - core index']
  #allocation1 [shape = 'u32[144,128]{1,0:T(1,128)}', space=vmem, size = 0x12000, scoped, tag = 'internal scratch']
  %s0 = inlined_call_operand.hbm [shape: f32[16,32], index: 0, kind: input, shape index: {}]
  %s1 = inlined_call_operand.hbm [shape: f32[16,32], index: 1, kind: input, shape index: {}]
  %s2 = inlined_call_operand.hbm [shape: f32[16,16], index: 2, kind: input, shape index: {}]
  %s3 = inlined_call_operand.hbm [shape: f32[32,128], index: 3, kind: input, shape index: {}]
  %s4 = inlined_call_operand.hbm [shape: f32[8,64], index: 4, kind: input, shape index: {}]
  %s5 = inlined_call_operand.hbm [shape: f32[16,32], index: 5, kind: output, shape index: {}]
  %s6 = sld [smem:[#allocation0]]
  $region50: #{tpu_custom_call.1} parent=0
    _
  %s8 = ssub.s32 1, %s6
  %s9 = scalar_select 0, %s8, %s6
  $region1: #{tpu_custom_call.1} parent=0
    #allocation2 [shape = 'u8[8192]{0}', space=vmem, size = 0x2000, scoped, tag = 'input window, operand 0, single buffered']
    #allocation3 [shape = 's32[1]{0}', space=sflag, size = 0x4, scoped, tag = 'scoped memory for tpu_custom_call.1']
    #allocation4 [shape = 's32[1]{0}', space=sflag, size = 0x4, scoped, tag = 'scoped memory for tpu_custom_call.1']
    #allocation5 [shape = 'u8[8192]{0}', space=vmem, size = 0x2000, scoped, tag = 'input window, operand 1, single buffered']
    #allocation6 [shape = 's32[1]{0}', space=sflag, size = 0x4, scoped, tag = 'scoped memory for tpu_custom_call.1']
    #allocation7 [shape = 'u8[8192]{0}', space=vmem, size = 0x2000, scoped, tag = 'input window, operand 2, single buffered']
    #allocation8 [shape = 'u8[16384]{0}', space=vmem, size = 0x4000, scoped, tag = 'input window, operand 3, single buffered']
    #allocation9 [shape = 's32[1]{0}', space=sflag, size = 0x4, scoped, tag = 'scoped memory for tpu_custom_call.1']
    #allocation10 [shape = 'u8[4096]{0}', space=vmem, size = 0x1000, scoped, tag = 'input window, operand 4, single buffered']
    #allocation11 [shape = 'u8[8192]{0}', space=vmem, size = 0x2000, scoped, tag = 'output window, operand 0, single buffered']
    %10 = vsyncpa [#allocation3], 0
    %11 = vsyncpa [#allocation6], 0
    %12 = vsyncpa [#allocation9], 0
    %13 = vsyncpa [#allocation4], 0
    // Predicated region
    $region2: #{tpu_custom_call.1} parent=1 // pred_check
      _
    $region3: #{tpu_custom_call.1} parent=1 // pred_check_branch
      %15 = sbr.rel (0) target = $region5
    $region4: #{tpu_custom_call.1} parent=1 // pred_region
      %s17 = ssub.s32 256, 256
      %18 = vsyncadd [#allocation3], %s17
      %s19 = sshll.u32 [#allocation2], 4
      %s20 = int_to_ptr.vmem [resolvable:$true] %s19
      %25 = dma.hbm_to_vmem [thread:$0]  %s0, 256, %s20, [#allocation3], 128, 128, 8
    $region5: #{tpu_custom_call.1} parent=1 // pred_fallthru
      _
    // Predicated region
    $region6: #{tpu_custom_call.1} parent=1 // pred_check
      _
    $region7: #{tpu_custom_call.1} parent=1 // pred_check_branch
      %27 = sbr.rel (0) target = $region9
    $region8: #{tpu_custom_call.1} parent=1 // pred_region
      %s29 = ssub.s32 256, 256
      %30 = vsyncadd [#allocation6], %s29
      %s31 = sshll.u32 [#allocation5], 4
      %s32 = int_to_ptr.vmem [resolvable:$true] %s31
      %37 = dma.hbm_to_vmem [thread:$0]  %s1, 256, %s32, [#allocation6], 128, 128, 8
    $region9: #{tpu_custom_call.1} parent=1 // pred_fallthru
      _
    // Predicated region
    $region10: #{tpu_custom_call.1} parent=1 // pred_check
      _
    $region11: #{tpu_custom_call.1} parent=1 // pred_check_branch
      %39 = sbr.rel (0) target = $region13
    $region12: #{tpu_custom_call.1} parent=1 // pred_region
      %s41 = ssub.s32 256, 256
      %42 = vsyncadd [#allocation6], %s41
      %s43 = sshll.u32 [#allocation7], 4
      %s44 = int_to_ptr.vmem [resolvable:$true] %s43
      %49 = dma.hbm_to_vmem [thread:$0]  %s2, 256, %s44, [#allocation6], 128, 128, 8
    $region13: #{tpu_custom_call.1} parent=1 // pred_fallthru
      _
    // Predicated region
    $region14: #{tpu_custom_call.1} parent=1 // pred_check
      _
    $region15: #{tpu_custom_call.1} parent=1 // pred_check_branch
      %51 = sbr.rel (0) target = $region17
    $region16: #{tpu_custom_call.1} parent=1 // pred_region
      %s53 = ssub.s32 512, 512
      %54 = vsyncadd [#allocation9], %s53
      %s55 = sshll.u32 [#allocation8], 4
      %s56 = int_to_ptr.vmem [resolvable:$true] %s55
      %61 = dma.hbm_to_vmem [thread:$0]  %s3, 512, %s56, [#allocation9], 128, 128, 8
    $region17: #{tpu_custom_call.1} parent=1 // pred_fallthru
      _
    // Predicated region
    $region18: #{tpu_custom_call.1} parent=1 // pred_check
      _
    $region19: #{tpu_custom_call.1} parent=1 // pred_check_branch
      %63 = sbr.rel (0) target = $region21
    $region20: #{tpu_custom_call.1} parent=1 // pred_region
      %s65 = ssub.s32 128, 128
      %66 = vsyncadd [#allocation9], %s65
      %s68 = sshll.u32 [#allocation10], 4
      %s69 = int_to_ptr.vmem [resolvable:$true] %s68
      %71 = dma.hbm_to_vmem [thread:$0]  %s4, 128, %s69, [#allocation9]
    $region21: #{tpu_custom_call.1} parent=1 // pred_fallthru
      _
    // Predicated region
    $region22: #{tpu_custom_call.1} parent=1 // pred_check
      _
    $region23: #{tpu_custom_call.1} parent=1 // pred_check_branch
      %73 = sbr.rel (0) target = $region25
    $region24: #{tpu_custom_call.1} parent=1 // pred_region
      %74 = dma.done [#allocation3], 256
    $region25: #{tpu_custom_call.1} parent=1 // pred_fallthru
      _
    // Predicated region
    $region26: #{tpu_custom_call.1} parent=1 // pred_check
      _
    $region27: #{tpu_custom_call.1} parent=1 // pred_check_branch
      %76 = sbr.rel (0) target = $region29
    $region28: #{tpu_custom_call.1} parent=1 // pred_region
      %77 = dma.done [#allocation6], 256
    $region29: #{tpu_custom_call.1} parent=1 // pred_fallthru
      _
    // Predicated region
    $region30: #{tpu_custom_call.1} parent=1 // pred_check
      _
    $region31: #{tpu_custom_call.1} parent=1 // pred_check_branch
      %79 = sbr.rel (0) target = $region33
    $region32: #{tpu_custom_call.1} parent=1 // pred_region
      %80 = dma.done [#allocation6], 256
    $region33: #{tpu_custom_call.1} parent=1 // pred_fallthru
      _
    // Predicated region
    $region34: #{tpu_custom_call.1} parent=1 // pred_check
      _
    $region35: #{tpu_custom_call.1} parent=1 // pred_check_branch
      %82 = sbr.rel (0) target = $region37
    $region36: #{tpu_custom_call.1} parent=1 // pred_region
      %83 = dma.done [#allocation9], 512
    $region37: #{tpu_custom_call.1} parent=1 // pred_fallthru
      _
    // Predicated region
    $region38: #{tpu_custom_call.1} parent=1 // pred_check
      _
    $region39: #{tpu_custom_call.1} parent=1 // pred_check_branch
      %85 = sbr.rel (0) target = $region41
    $region40: #{tpu_custom_call.1} parent=1 // pred_region
      %86 = dma.done [#allocation9], 128
    $region41: #{tpu_custom_call.1} parent=1 // pred_fallthru
      _
    %v87 = vld [vmem:[#allocation2] sm:$0xff]
    %v88 = vld [vmem:[#allocation2 + $0x8] sm:$0xff]
    %v89 = vld [vmem:[#allocation5] sm:$0xff]
    %v90 = vld [vmem:[#allocation5 + $0x8] sm:$0xff]
    %v91 = vadd.f32 %v87, %v89
    %v92 = vadd.f32 %v88, %v90
    %v93 = vld [vmem:[#allocation8] sm:$0xff]
    %v94 = vld [vmem:[#allocation8 + $0x8] sm:$0xff]
    %v95 = vld [vmem:[#allocation8 + $0x10] sm:$0xff]
    %v96 = vld [vmem:[#allocation8 + $0x18] sm:$0xff]
    %v97 = vld [vmem:[#allocation10] sm:$0x1]
    %v98 = vld [vmem:[#allocation10 + $0x1] sm:$0x1]
    %v99 = vld [vmem:[#allocation10 + $0x2] sm:$0x1]
    %v100 = vld [vmem:[#allocation7] sm:$0xff]
    %v101 = vld [vmem:[#allocation7 + $0x8] sm:$0xff]
    %v102 = vlaneseq
    %v103 = vshrl.u32 %v102, 7
    %v104 = vsub.s32 0, %v103
    %v105 = vrot.slane %v97, %v104
    %vm106 = vcmask 261120
    %v108 = vsel %vm106, %v91, 0
    %v111 = vsel %vm106, %v92, 0
    %113 = vmatprep.subr.mxu0 0.0
    %114 = vmatpush1.msra.mxu0 0.0
    %115 = vmatprep.subr.mxu0 0.0
    %116 = vmatpush1.msra.mxu0 0.0
    %117 = vmatprep.subr.mxu0 0.0
    %118 = vmatpush1.msra.mxu0 0.0
    %119 = vmatprep.subr.mxu0 0.0
    %120 = vmatpush1.msra.mxu0 0.0
    %121 = vmatprep.subr.mxu0 0.0
    %122 = vmatpush1.msra.mxu0 0.0
    %123 = vmatprep.subr.mxu0 0.0
    %124 = vmatpush1.msra.mxu0 0.0
    %125 = vmatprep.subr.mxu0 0.0
    %126 = vmatpush1.msra.mxu0 0.0
    %127 = vmatprep.subr.mxu0 0.0
    %128 = vmatpush1.msra.mxu0 0.0
    %129 = vmatprep.subr.mxu0 0.0
    %130 = vmatpush1.msra.mxu0 0.0
    %131 = vmatprep.subr.mxu0 0.0
    %132 = vmatpush1.msra.mxu0 0.0
    %133 = vmatprep.subr.mxu0 0.0
    %134 = vmatpush1.msra.mxu0 0.0
    %135 = vmatprep.subr.mxu0 0.0
    %136 = vmatpush1.msra.mxu0 0.0
    %137 = vmatprep.subr.mxu0 0.0
    %138 = vmatpush1.msra.mxu0 %v96
    %139 = vmatprep.subr.mxu0 0.0
    %140 = vmatpush1.msra.mxu0 %v95
    %141 = vmatprep.subr.mxu0 0.0
    %142 = vmatpush1.msra.mxu0 %v94
    %143 = vmatprep.subr.mxu0 0.0
    %144 = vmatpush1.msra.mxu0 %v93
    %145 = vmatprep.subr.mxu0 0.0
    %146 = vmatpush2.msra.mxu0 0.0
    %147 = vmatprep.subr.mxu0 0.0
    %148 = vmatpush2.msra.mxu0 0.0
    %149 = vmatprep.subr.mxu0 0.0
    %150 = vmatpush2.msra.mxu0 0.0
    %151 = vmatprep.subr.mxu0 0.0
    %152 = vmatpush2.msra.mxu0 0.0
    %153 = vmatprep.subr.mxu0 0.0
    %154 = vmatpush2.msra.mxu0 0.0
    %155 = vmatprep.subr.mxu0 0.0
    %156 = vmatpush2.msra.mxu0 0.0
    %157 = vmatprep.subr.mxu0 0.0
    %158 = vmatpush2.msra.mxu0 0.0
    %159 = vmatprep.subr.mxu0 0.0
    %160 = vmatpush2.msra.mxu0 0.0
    %161 = vmatprep.subr.mxu0 0.0
    %162 = vmatpush2.msra.mxu0 0.0
    %163 = vmatprep.subr.mxu0 0.0
    %164 = vmatpush2.msra.mxu0 0.0
    %165 = vmatprep.subr.mxu0 0.0
    %166 = vmatpush2.msra.mxu0 0.0
    %167 = vmatprep.subr.mxu0 0.0
    %168 = vmatpush2.msra.mxu0 0.0
    %169 = vmatprep.subr.mxu0 0.0
    %170 = vmatpush2.msra.mxu0 0.0
    %171 = vmatprep.subr.mxu0 0.0
    %172 = vmatpush2.msra.mxu0 0.0
    %173 = vmatprep.subr.mxu0 0.0
    %174 = vmatpush2.msra.mxu0 0.0
    %175 = vmatprep.subr.mxu0 0.0
    %176 = vmatpush2.msra.mxu0 0.0
    %177 = vmatprep.mubr.f32.mxu0 0.0
    %178 = vmatmul.mubr.f32.gmra.mxu0 %v108
    %v179 = vpop.f32.mrf.mxu0
    %v180 = vadd.f32 %v105, %v179
    %v181 = vpop.f32.mrf.mxu0
    %182 = vmatprep.mubr.f32.mxu0 0.0
    %183 = vmatmul.mubr.f32.gmra.mxu0 %v111
    %v184 = vpop.f32.mrf.mxu0
    %v185 = vadd.f32 %v105, %v184
    %v186 = vpop.f32.mrf.mxu0
    %187 = vdwg.mxu0
    %v188 = vlaneseq
    %v189 = vshrl.u32 %v188, 7
    %v190 = vsub.s32 0, %v189
    %v191 = vrot.slane %v98, %v190
    %196 = vrot.lane.b32.xlu0 %v93, 64
    %v197 = vpop.permute.xlu0 %196
    %198 = vrot.lane.b32.xlu0 %v94, 64
    %v199 = vpop.permute.xlu0 %198
    %200 = vrot.lane.b32.xlu0 %v95, 64
    %v201 = vpop.permute.xlu0 %200
    %202 = vrot.lane.b32.xlu0 %v96, 64
    %v203 = vpop.permute.xlu0 %202
    %v209 = vsel %vm106, %v87, 0
    %v212 = vsel %vm106, %v88, 0
    %214 = vmatprep.subr.mxu0 0.0
    %215 = vmatpush1.msra.mxu0 0.0
    %216 = vmatprep.subr.mxu0 0.0
    %217 = vmatpush1.msra.mxu0 0.0
    %218 = vmatprep.subr.mxu0 0.0
    %219 = vmatpush1.msra.mxu0 0.0
    %220 = vmatprep.subr.mxu0 0.0
    %221 = vmatpush1.msra.mxu0 0.0
    %222 = vmatprep.subr.mxu0 0.0
    %223 = vmatpush1.msra.mxu0 0.0
    %224 = vmatprep.subr.mxu0 0.0
    %225 = vmatpush1.msra.mxu0 0.0
    %226 = vmatprep.subr.mxu0 0.0
    %227 = vmatpush1.msra.mxu0 0.0
    %228 = vmatprep.subr.mxu0 0.0
    %229 = vmatpush1.msra.mxu0 0.0
    %230 = vmatprep.subr.mxu0 0.0
    %231 = vmatpush1.msra.mxu0 0.0
    %232 = vmatprep.subr.mxu0 0.0
    %233 = vmatpush1.msra.mxu0 0.0
    %234 = vmatprep.subr.mxu0 0.0
    %235 = vmatpush1.msra.mxu0 0.0
    %236 = vmatprep.subr.mxu0 0.0
    %237 = vmatpush1.msra.mxu0 0.0
    %238 = vmatprep.subr.mxu0 0.0
    %239 = vmatpush1.msra.mxu0 %v203
    %240 = vmatprep.subr.mxu0 0.0
    %241 = vmatpush1.msra.mxu0 %v201
    %242 = vmatprep.subr.mxu0 0.0
    %243 = vmatpush1.msra.mxu0 %v199
    %244 = vmatprep.subr.mxu0 0.0
    %245 = vmatpush1.msra.mxu0 %v197
    %246 = vmatprep.subr.mxu0 0.0
    %247 = vmatpush2.msra.mxu0 0.0
    %248 = vmatprep.subr.mxu0 0.0
    %249 = vmatpush2.msra.mxu0 0.0
    %250 = vmatprep.subr.mxu0 0.0
    %251 = vmatpush2.msra.mxu0 0.0
    %252 = vmatprep.subr.mxu0 0.0
    %253 = vmatpush2.msra.mxu0 0.0
    %254 = vmatprep.subr.mxu0 0.0
    %255 = vmatpush2.msra.mxu0 0.0
    %256 = vmatprep.subr.mxu0 0.0
    %257 = vmatpush2.msra.mxu0 0.0
    %258 = vmatprep.subr.mxu0 0.0
    %259 = vmatpush2.msra.mxu0 0.0
    %260 = vmatprep.subr.mxu0 0.0
    %261 = vmatpush2.msra.mxu0 0.0
    %262 = vmatprep.subr.mxu0 0.0
    %263 = vmatpush2.msra.mxu0 0.0
    %264 = vmatprep.subr.mxu0 0.0
    %265 = vmatpush2.msra.mxu0 0.0
    %266 = vmatprep.subr.mxu0 0.0
    %267 = vmatpush2.msra.mxu0 0.0
    %268 = vmatprep.subr.mxu0 0.0
    %269 = vmatpush2.msra.mxu0 0.0
    %270 = vmatprep.subr.mxu0 0.0
    %271 = vmatpush2.msra.mxu0 0.0
    %272 = vmatprep.subr.mxu0 0.0
    %273 = vmatpush2.msra.mxu0 0.0
    %274 = vmatprep.subr.mxu0 0.0
    %275 = vmatpush2.msra.mxu0 0.0
    %276 = vmatprep.subr.mxu0 0.0
    %277 = vmatpush2.msra.mxu0 0.0
    %278 = vmatprep.mubr.f32.mxu0 0.0
    %279 = vmatmul.mubr.f32.gmra.mxu0 %v209
    %v280 = vpop.f32.mrf.mxu0
    %v281 = vadd.f32 %v191, %v280
    %v282 = vpop.f32.mrf.mxu0
    %283 = vmatprep.mubr.f32.mxu0 0.0
    %284 = vmatmul.mubr.f32.gmra.mxu0 %v212
    %v285 = vpop.f32.mrf.mxu0
    %v286 = vadd.f32 %v191, %v285
    %v287 = vpop.f32.mrf.mxu0
    %288 = vdwg.mxu0
    %291 = vrot.lane.b32.xlu0 %v180, 96
    %v292 = vpop.permute.xlu0 %291
    %293 = vrot.lane.b32.xlu0 %v185, 96
    %v294 = vpop.permute.xlu0 %293
    %vm295 = vcmask 64512
    %v296 = vsel %vm295, %v180, 0
    %v298 = vsel %vm295, %v185, 0
    %v300 = vsel %vm295, %v292, 0
    %v302 = vsel %vm295, %v294, 0
    %304 = vmatprep.subr.mxu0 0.0
    %305 = vmatpush1.xpose.msra.mxu0 0.0
    %306 = vmatprep.subr.mxu0 0.0
    %307 = vmatpush1.xpose.msra.mxu0 0.0
    %308 = vmatprep.subr.mxu0 0.0
    %309 = vmatpush1.xpose.msra.mxu0 0.0
    %310 = vmatprep.subr.mxu0 0.0
    %311 = vmatpush1.xpose.msra.mxu0 0.0
    %312 = vmatprep.subr.mxu0 0.0
    %313 = vmatpush1.xpose.msra.mxu0 0.0
    %314 = vmatprep.subr.mxu0 0.0
    %315 = vmatpush1.xpose.msra.mxu0 0.0
    %316 = vmatprep.subr.mxu0 0.0
    %317 = vmatpush1.xpose.msra.mxu0 0.0
    %318 = vmatprep.subr.mxu0 0.0
    %319 = vmatpush1.xpose.msra.mxu0 0.0
    %320 = vmatprep.subr.mxu0 0.0
    %321 = vmatpush1.xpose.msra.mxu0 0.0
    %322 = vmatprep.subr.mxu0 0.0
    %323 = vmatpush1.xpose.msra.mxu0 0.0
    %324 = vmatprep.subr.mxu0 0.0
    %325 = vmatpush1.xpose.msra.mxu0 0.0
    %326 = vmatprep.subr.mxu0 0.0
    %327 = vmatpush1.xpose.msra.mxu0 0.0
    %328 = vmatprep.subr.mxu0 0.0
    %329 = vmatpush1.xpose.msra.mxu0 0.0
    %330 = vmatprep.subr.mxu0 0.0
    %331 = vmatpush1.xpose.msra.mxu0 0.0
    %332 = vmatprep.subr.mxu0 0.0
    %333 = vmatpush1.xpose.msra.mxu0 %v302
    %334 = vmatprep.subr.mxu0 0.0
    %335 = vmatpush1.xpose.msra.mxu0 %v300
    %336 = vmatprep.subr.mxu0 0.0
    %337 = vmatpush2.xpose.msra.mxu0 0.0
    %338 = vmatprep.subr.mxu0 0.0
    %339 = vmatpush2.xpose.msra.mxu0 0.0
    %340 = vmatprep.subr.mxu0 0.0
    %341 = vmatpush2.xpose.msra.mxu0 0.0
    %342 = vmatprep.subr.mxu0 0.0
    %343 = vmatpush2.xpose.msra.mxu0 0.0
    %344 = vmatprep.subr.mxu0 0.0
    %345 = vmatpush2.xpose.msra.mxu0 0.0
    %346 = vmatprep.subr.mxu0 0.0
    %347 = vmatpush2.xpose.msra.mxu0 0.0
    %348 = vmatprep.subr.mxu0 0.0
    %349 = vmatpush2.xpose.msra.mxu0 0.0
    %350 = vmatprep.subr.mxu0 0.0
    %351 = vmatpush2.xpose.msra.mxu0 0.0
    %352 = vmatprep.subr.mxu0 0.0
    %353 = vmatpush2.xpose.msra.mxu0 0.0
    %354 = vmatprep.subr.mxu0 0.0
    %355 = vmatpush2.xpose.msra.mxu0 0.0
    %356 = vmatprep.subr.mxu0 0.0
    %357 = vmatpush2.xpose.msra.mxu0 0.0
    %358 = vmatprep.subr.mxu0 0.0
    %359 = vmatpush2.xpose.msra.mxu0 0.0
    %360 = vmatprep.subr.mxu0 0.0
    %361 = vmatpush2.xpose.msra.mxu0 0.0
    %362 = vmatprep.subr.mxu0 0.0
    %363 = vmatpush2.xpose.msra.mxu0 0.0
    %364 = vmatprep.subr.mxu0 0.0
    %365 = vmatpush2.xpose.msra.mxu0 0.0
    %366 = vmatprep.subr.mxu0 0.0
    %367 = vmatpush2.xpose.msra.mxu0 0.0
    %368 = vmatprep.mubr.f32.mxu0 0.0
    %369 = vmatmul.mubr.f32.gmra.mxu0 %v296
    %v370 = vpop.f32.mrf.mxu0
    %v371 = vadd.f32 %v100, %v370
    %v372 = vpop.f32.mrf.mxu0
    %373 = vmatprep.mubr.f32.mxu0 0.0
    %374 = vmatmul.mubr.f32.gmra.mxu0 %v298
    %v375 = vpop.f32.mrf.mxu0
    %v376 = vadd.f32 %v101, %v375
    %v377 = vpop.f32.mrf.mxu0
    %378 = vdwg.mxu0
    %vm379 = vcmask 130048
    %v380 = vsel %vm379, %v371, -inf
    %381 = vmax.xlane.f32.xlu0 %v380
    %v382 = vpop.xlane.xlu0 %381
    %v383 = vsel %vm379, %v376, -inf
    %384 = vmax.xlane.f32.xlu0 %v383
    %v385 = vpop.xlane.xlu0 %384
    %v386 = vsub.f32 %v371, %v382
    %v387 = vsub.f32 %v376, %v385
    %v388 = vmul.f32 %v386, 1.442695
    %v389 = vpow.pop %v388
    %v390 = vmul.f32 %v387, 1.442695
    %v391 = vpow.pop %v390
    %v392 = vsel %vm379, %v389, 0.0
    %393 = vadd.xlane.f32.xlu0 %v392
    %v394 = vpop.xlane.xlu0 %393
    %v395 = vsel %vm379, %v391, 0.0
    %396 = vadd.xlane.f32.xlu0 %v395
    %v397 = vpop.xlane.xlu0 %396
    %v398 = vrcp.pop %v394
    %v399 = vrcp.pop %v397
    %v401 = vsel %vm379, %v389, 0
    %v404 = vsel %vm379, %v391, 0
    %406 = vmatprep.subr.mxu0 0.0
    %407 = vmatpush1.msra.mxu0 0.0
    %408 = vmatprep.subr.mxu0 0.0
    %409 = vmatpush1.msra.mxu0 0.0
    %410 = vmatprep.subr.mxu0 0.0
    %411 = vmatpush1.msra.mxu0 0.0
    %412 = vmatprep.subr.mxu0 0.0
    %413 = vmatpush1.msra.mxu0 0.0
    %414 = vmatprep.subr.mxu0 0.0
    %415 = vmatpush1.msra.mxu0 0.0
    %416 = vmatprep.subr.mxu0 0.0
    %417 = vmatpush1.msra.mxu0 0.0
    %418 = vmatprep.subr.mxu0 0.0
    %419 = vmatpush1.msra.mxu0 0.0
    %420 = vmatprep.subr.mxu0 0.0
    %421 = vmatpush1.msra.mxu0 0.0
    %422 = vmatprep.subr.mxu0 0.0
    %423 = vmatpush1.msra.mxu0 0.0
    %424 = vmatprep.subr.mxu0 0.0
    %425 = vmatpush1.msra.mxu0 0.0
    %426 = vmatprep.subr.mxu0 0.0
    %427 = vmatpush1.msra.mxu0 0.0
    %428 = vmatprep.subr.mxu0 0.0
    %429 = vmatpush1.msra.mxu0 0.0
    %430 = vmatprep.subr.mxu0 0.0
    %431 = vmatpush1.msra.mxu0 0.0
    %432 = vmatprep.subr.mxu0 0.0
    %433 = vmatpush1.msra.mxu0 0.0
    %434 = vmatprep.subr.mxu0 0.0
    %435 = vmatpush1.msra.mxu0 %v286
    %436 = vmatprep.subr.mxu0 0.0
    %437 = vmatpush1.msra.mxu0 %v281
    %438 = vmatprep.subr.mxu0 0.0
    %439 = vmatpush2.msra.mxu0 0.0
    %440 = vmatprep.subr.mxu0 0.0
    %441 = vmatpush2.msra.mxu0 0.0
    %442 = vmatprep.subr.mxu0 0.0
    %443 = vmatpush2.msra.mxu0 0.0
    %444 = vmatprep.subr.mxu0 0.0
    %445 = vmatpush2.msra.mxu0 0.0
    %446 = vmatprep.subr.mxu0 0.0
    %447 = vmatpush2.msra.mxu0 0.0
    %448 = vmatprep.subr.mxu0 0.0
    %449 = vmatpush2.msra.mxu0 0.0
    %450 = vmatprep.subr.mxu0 0.0
    %451 = vmatpush2.msra.mxu0 0.0
    %452 = vmatprep.subr.mxu0 0.0
    %453 = vmatpush2.msra.mxu0 0.0
    %454 = vmatprep.subr.mxu0 0.0
    %455 = vmatpush2.msra.mxu0 0.0
    %456 = vmatprep.subr.mxu0 0.0
    %457 = vmatpush2.msra.mxu0 0.0
    %458 = vmatprep.subr.mxu0 0.0
    %459 = vmatpush2.msra.mxu0 0.0
    %460 = vmatprep.subr.mxu0 0.0
    %461 = vmatpush2.msra.mxu0 0.0
    %462 = vmatprep.subr.mxu0 0.0
    %463 = vmatpush2.msra.mxu0 0.0
    %464 = vmatprep.subr.mxu0 0.0
    %465 = vmatpush2.msra.mxu0 0.0
    %466 = vmatprep.subr.mxu0 0.0
    %467 = vmatpush2.msra.mxu0 0.0
    %468 = vmatprep.subr.mxu0 0.0
    %469 = vmatpush2.msra.mxu0 0.0
    %470 = vmatprep.mubr.f32.mxu0 0.0
    %471 = vmatmul.mubr.f32.gmra.mxu0 %v401
    %v472 = vpop.f32.mrf.mxu0
    %v473 = vadd.f32 0.0, %v472
    %v474 = vpop.f32.mrf.mxu0
    %475 = vmatprep.mubr.f32.mxu0 0.0
    %476 = vmatmul.mubr.f32.gmra.mxu0 %v404
    %v477 = vpop.f32.mrf.mxu0
    %v478 = vadd.f32 0.0, %v477
    %v479 = vpop.f32.mrf.mxu0
    %480 = vdwg.mxu0
    %v481 = vmul.f32 %v473, %v398
    %v482 = vmul.f32 %v478, %v399
    %483 = vrot.lane.b32.xlu0 %v180, 120
    %v484 = vpop.permute.xlu0 %483
    %485 = vrot.lane.b32.xlu0 %v185, 120
    %v486 = vpop.permute.xlu0 %485
    %487 = vrot.lane.b32.xlu0 %v180, 88
    %v488 = vpop.permute.xlu0 %487
    %489 = vrot.lane.b32.xlu0 %v185, 88
    %v490 = vpop.permute.xlu0 %489
    %v491 = vsel %vm295, %v484, 0
    %v493 = vsel %vm295, %v486, 0
    %v495 = vsel %vm295, %v488, 0
    %v497 = vsel %vm295, %v490, 0
    %499 = vmatprep.subr.mxu0 0.0
    %500 = vmatpush1.xpose.msra.mxu0 0.0
    %501 = vmatprep.subr.mxu0 0.0
    %502 = vmatpush1.xpose.msra.mxu0 0.0
    %503 = vmatprep.subr.mxu0 0.0
    %504 = vmatpush1.xpose.msra.mxu0 0.0
    %505 = vmatprep.subr.mxu0 0.0
    %506 = vmatpush1.xpose.msra.mxu0 0.0
    %507 = vmatprep.subr.mxu0 0.0
    %508 = vmatpush1.xpose.msra.mxu0 0.0
    %509 = vmatprep.subr.mxu0 0.0
    %510 = vmatpush1.xpose.msra.mxu0 0.0
    %511 = vmatprep.subr.mxu0 0.0
    %512 = vmatpush1.xpose.msra.mxu0 0.0
    %513 = vmatprep.subr.mxu0 0.0
    %514 = vmatpush1.xpose.msra.mxu0 0.0
    %515 = vmatprep.subr.mxu0 0.0
    %516 = vmatpush1.xpose.msra.mxu0 0.0
    %517 = vmatprep.subr.mxu0 0.0
    %518 = vmatpush1.xpose.msra.mxu0 0.0
    %519 = vmatprep.subr.mxu0 0.0
    %520 = vmatpush1.xpose.msra.mxu0 0.0
    %521 = vmatprep.subr.mxu0 0.0
    %522 = vmatpush1.xpose.msra.mxu0 0.0
    %523 = vmatprep.subr.mxu0 0.0
    %524 = vmatpush1.xpose.msra.mxu0 0.0
    %525 = vmatprep.subr.mxu0 0.0
    %526 = vmatpush1.xpose.msra.mxu0 0.0
    %527 = vmatprep.subr.mxu0 0.0
    %528 = vmatpush1.xpose.msra.mxu0 %v497
    %529 = vmatprep.subr.mxu0 0.0
    %530 = vmatpush1.xpose.msra.mxu0 %v495
    %531 = vmatprep.subr.mxu0 0.0
    %532 = vmatpush2.xpose.msra.mxu0 0.0
    %533 = vmatprep.subr.mxu0 0.0
    %534 = vmatpush2.xpose.msra.mxu0 0.0
    %535 = vmatprep.subr.mxu0 0.0
    %536 = vmatpush2.xpose.msra.mxu0 0.0
    %537 = vmatprep.subr.mxu0 0.0
    %538 = vmatpush2.xpose.msra.mxu0 0.0
    %539 = vmatprep.subr.mxu0 0.0
    %540 = vmatpush2.xpose.msra.mxu0 0.0
    %541 = vmatprep.subr.mxu0 0.0
    %542 = vmatpush2.xpose.msra.mxu0 0.0
    %543 = vmatprep.subr.mxu0 0.0
    %544 = vmatpush2.xpose.msra.mxu0 0.0
    %545 = vmatprep.subr.mxu0 0.0
    %546 = vmatpush2.xpose.msra.mxu0 0.0
    %547 = vmatprep.subr.mxu0 0.0
    %548 = vmatpush2.xpose.msra.mxu0 0.0
    %549 = vmatprep.subr.mxu0 0.0
    %550 = vmatpush2.xpose.msra.mxu0 0.0
    %551 = vmatprep.subr.mxu0 0.0
    %552 = vmatpush2.xpose.msra.mxu0 0.0
    %553 = vmatprep.subr.mxu0 0.0
    %554 = vmatpush2.xpose.msra.mxu0 0.0
    %555 = vmatprep.subr.mxu0 0.0
    %556 = vmatpush2.xpose.msra.mxu0 0.0
    %557 = vmatprep.subr.mxu0 0.0
    %558 = vmatpush2.xpose.msra.mxu0 0.0
    %559 = vmatprep.subr.mxu0 0.0
    %560 = vmatpush2.xpose.msra.mxu0 0.0
    %561 = vmatprep.subr.mxu0 0.0
    %562 = vmatpush2.xpose.msra.mxu0 0.0
    %563 = vmatprep.mubr.f32.mxu0 0.0
    %564 = vmatmul.mubr.f32.gmra.mxu0 %v491
    %v565 = vpop.f32.mrf.mxu0
    %v566 = vadd.f32 %v100, %v565
    %v567 = vpop.f32.mrf.mxu0
    %568 = vmatprep.mubr.f32.mxu0 0.0
    %569 = vmatmul.mubr.f32.gmra.mxu0 %v493
    %v570 = vpop.f32.mrf.mxu0
    %v571 = vadd.f32 %v101, %v570
    %v572 = vpop.f32.mrf.mxu0
    %573 = vdwg.mxu0
    %v574 = vsel %vm379, %v566, -inf
    %575 = vmax.xlane.f32.xlu0 %v574
    %v576 = vpop.xlane.xlu0 %575
    %v577 = vsel %vm379, %v571, -inf
    %578 = vmax.xlane.f32.xlu0 %v577
    %v579 = vpop.xlane.xlu0 %578
    %v580 = vsub.f32 %v566, %v576
    %v581 = vsub.f32 %v571, %v579
    %v582 = vmul.f32 %v580, 1.442695
    %v583 = vpow.pop %v582
    %v584 = vmul.f32 %v581, 1.442695
    %v585 = vpow.pop %v584
    %v586 = vsel %vm379, %v583, 0.0
    %587 = vadd.xlane.f32.xlu0 %v586
    %v588 = vpop.xlane.xlu0 %587
    %v589 = vsel %vm379, %v585, 0.0
    %590 = vadd.xlane.f32.xlu0 %v589
    %v591 = vpop.xlane.xlu0 %590
    %v592 = vrcp.pop %v588
    %v593 = vrcp.pop %v591
    %596 = vrot.lane.b32.xlu0 %v281, 120
    %v597 = vpop.permute.xlu0 %596
    %598 = vrot.lane.b32.xlu0 %v286, 120
    %v599 = vpop.permute.xlu0 %598
    %v603 = vsel %vm379, %v583, 0
    %v606 = vsel %vm379, %v585, 0
    %608 = vmatprep.subr.mxu0 0.0
    %609 = vmatpush1.msra.mxu0 0.0
    %610 = vmatprep.subr.mxu0 0.0
    %611 = vmatpush1.msra.mxu0 0.0
    %612 = vmatprep.subr.mxu0 0.0
    %613 = vmatpush1.msra.mxu0 0.0
    %614 = vmatprep.subr.mxu0 0.0
    %615 = vmatpush1.msra.mxu0 0.0
    %616 = vmatprep.subr.mxu0 0.0
    %617 = vmatpush1.msra.mxu0 0.0
    %618 = vmatprep.subr.mxu0 0.0
    %619 = vmatpush1.msra.mxu0 0.0
    %620 = vmatprep.subr.mxu0 0.0
    %621 = vmatpush1.msra.mxu0 0.0
    %622 = vmatprep.subr.mxu0 0.0
    %623 = vmatpush1.msra.mxu0 0.0
    %624 = vmatprep.subr.mxu0 0.0
    %625 = vmatpush1.msra.mxu0 0.0
    %626 = vmatprep.subr.mxu0 0.0
    %627 = vmatpush1.msra.mxu0 0.0
    %628 = vmatprep.subr.mxu0 0.0
    %629 = vmatpush1.msra.mxu0 0.0
    %630 = vmatprep.subr.mxu0 0.0
    %631 = vmatpush1.msra.mxu0 0.0
    %632 = vmatprep.subr.mxu0 0.0
    %633 = vmatpush1.msra.mxu0 0.0
    %634 = vmatprep.subr.mxu0 0.0
    %635 = vmatpush1.msra.mxu0 0.0
    %636 = vmatprep.subr.mxu0 0.0
    %637 = vmatpush1.msra.mxu0 %v599
    %638 = vmatprep.subr.mxu0 0.0
    %639 = vmatpush1.msra.mxu0 %v597
    %640 = vmatprep.subr.mxu0 0.0
    %641 = vmatpush2.msra.mxu0 0.0
    %642 = vmatprep.subr.mxu0 0.0
    %643 = vmatpush2.msra.mxu0 0.0
    %644 = vmatprep.subr.mxu0 0.0
    %645 = vmatpush2.msra.mxu0 0.0
    %646 = vmatprep.subr.mxu0 0.0
    %647 = vmatpush2.msra.mxu0 0.0
    %648 = vmatprep.subr.mxu0 0.0
    %649 = vmatpush2.msra.mxu0 0.0
    %650 = vmatprep.subr.mxu0 0.0
    %651 = vmatpush2.msra.mxu0 0.0
    %652 = vmatprep.subr.mxu0 0.0
    %653 = vmatpush2.msra.mxu0 0.0
    %654 = vmatprep.subr.mxu0 0.0
    %655 = vmatpush2.msra.mxu0 0.0
    %656 = vmatprep.subr.mxu0 0.0
    %657 = vmatpush2.msra.mxu0 0.0
    %658 = vmatprep.subr.mxu0 0.0
    %659 = vmatpush2.msra.mxu0 0.0
    %660 = vmatprep.subr.mxu0 0.0
    %661 = vmatpush2.msra.mxu0 0.0
    %662 = vmatprep.subr.mxu0 0.0
    %663 = vmatpush2.msra.mxu0 0.0
    %664 = vmatprep.subr.mxu0 0.0
    %665 = vmatpush2.msra.mxu0 0.0
    %666 = vmatprep.subr.mxu0 0.0
    %667 = vmatpush2.msra.mxu0 0.0
    %668 = vmatprep.subr.mxu0 0.0
    %669 = vmatpush2.msra.mxu0 0.0
    %670 = vmatprep.subr.mxu0 0.0
    %671 = vmatpush2.msra.mxu0 0.0
    %672 = vmatprep.mubr.f32.mxu0 0.0
    %673 = vmatmul.mubr.f32.gmra.mxu0 %v603
    %v674 = vpop.f32.mrf.mxu0
    %v675 = vadd.f32 0.0, %v674
    %v676 = vpop.f32.mrf.mxu0
    %677 = vmatprep.mubr.f32.mxu0 0.0
    %678 = vmatmul.mubr.f32.gmra.mxu0 %v606
    %v679 = vpop.f32.mrf.mxu0
    %v680 = vadd.f32 0.0, %v679
    %v681 = vpop.f32.mrf.mxu0
    %682 = vdwg.mxu0
    %v683 = vmul.f32 %v675, %v592
    %v684 = vmul.f32 %v680, %v593
    %685 = vrot.lane.b32.xlu0 %v180, 112
    %v686 = vpop.permute.xlu0 %685
    %687 = vrot.lane.b32.xlu0 %v185, 112
    %v688 = vpop.permute.xlu0 %687
    %689 = vrot.lane.b32.xlu0 %v180, 80
    %v690 = vpop.permute.xlu0 %689
    %691 = vrot.lane.b32.xlu0 %v185, 80
    %v692 = vpop.permute.xlu0 %691
    %v693 = vsel %vm295, %v686, 0
    %v695 = vsel %vm295, %v688, 0
    %v697 = vsel %vm295, %v690, 0
    %v699 = vsel %vm295, %v692, 0
    %701 = vmatprep.subr.mxu0 0.0
    %702 = vmatpush1.xpose.msra.mxu0 0.0
    %703 = vmatprep.subr.mxu0 0.0
    %704 = vmatpush1.xpose.msra.mxu0 0.0
    %705 = vmatprep.subr.mxu0 0.0
    %706 = vmatpush1.xpose.msra.mxu0 0.0
    %707 = vmatprep.subr.mxu0 0.0
    %708 = vmatpush1.xpose.msra.mxu0 0.0
    %709 = vmatprep.subr.mxu0 0.0
    %710 = vmatpush1.xpose.msra.mxu0 0.0
    %711 = vmatprep.subr.mxu0 0.0
    %712 = vmatpush1.xpose.msra.mxu0 0.0
    %713 = vmatprep.subr.mxu0 0.0
    %714 = vmatpush1.xpose.msra.mxu0 0.0
    %715 = vmatprep.subr.mxu0 0.0
    %716 = vmatpush1.xpose.msra.mxu0 0.0
    %717 = vmatprep.subr.mxu0 0.0
    %718 = vmatpush1.xpose.msra.mxu0 0.0
    %719 = vmatprep.subr.mxu0 0.0
    %720 = vmatpush1.xpose.msra.mxu0 0.0
    %721 = vmatprep.subr.mxu0 0.0
    %722 = vmatpush1.xpose.msra.mxu0 0.0
    %723 = vmatprep.subr.mxu0 0.0
    %724 = vmatpush1.xpose.msra.mxu0 0.0
    %725 = vmatprep.subr.mxu0 0.0
    %726 = vmatpush1.xpose.msra.mxu0 0.0
    %727 = vmatprep.subr.mxu0 0.0
    %728 = vmatpush1.xpose.msra.mxu0 0.0
    %729 = vmatprep.subr.mxu0 0.0
    %730 = vmatpush1.xpose.msra.mxu0 %v699
    %731 = vmatprep.subr.mxu0 0.0
    %732 = vmatpush1.xpose.msra.mxu0 %v697
    %733 = vmatprep.subr.mxu0 0.0
    %734 = vmatpush2.xpose.msra.mxu0 0.0
    %735 = vmatprep.subr.mxu0 0.0
    %736 = vmatpush2.xpose.msra.mxu0 0.0
    %737 = vmatprep.subr.mxu0 0.0
    %738 = vmatpush2.xpose.msra.mxu0 0.0
    %739 = vmatprep.subr.mxu0 0.0
    %740 = vmatpush2.xpose.msra.mxu0 0.0
    %741 = vmatprep.subr.mxu0 0.0
    %742 = vmatpush2.xpose.msra.mxu0 0.0
    %743 = vmatprep.subr.mxu0 0.0
    %744 = vmatpush2.xpose.msra.mxu0 0.0
    %745 = vmatprep.subr.mxu0 0.0
    %746 = vmatpush2.xpose.msra.mxu0 0.0
    %747 = vmatprep.subr.mxu0 0.0
    %748 = vmatpush2.xpose.msra.mxu0 0.0
    %749 = vmatprep.subr.mxu0 0.0
    %750 = vmatpush2.xpose.msra.mxu0 0.0
    %751 = vmatprep.subr.mxu0 0.0
    %752 = vmatpush2.xpose.msra.mxu0 0.0
    %753 = vmatprep.subr.mxu0 0.0
    %754 = vmatpush2.xpose.msra.mxu0 0.0
    %755 = vmatprep.subr.mxu0 0.0
    %756 = vmatpush2.xpose.msra.mxu0 0.0
    %757 = vmatprep.subr.mxu0 0.0
    %758 = vmatpush2.xpose.msra.mxu0 0.0
    %759 = vmatprep.subr.mxu0 0.0
    %760 = vmatpush2.xpose.msra.mxu0 0.0
    %761 = vmatprep.subr.mxu0 0.0
    %762 = vmatpush2.xpose.msra.mxu0 0.0
    %763 = vmatprep.subr.mxu0 0.0
    %764 = vmatpush2.xpose.msra.mxu0 0.0
    %765 = vmatprep.mubr.f32.mxu0 0.0
    %766 = vmatmul.mubr.f32.gmra.mxu0 %v693
    %v767 = vpop.f32.mrf.mxu0
    %v768 = vadd.f32 %v100, %v767
    %v769 = vpop.f32.mrf.mxu0
    %770 = vmatprep.mubr.f32.mxu0 0.0
    %771 = vmatmul.mubr.f32.gmra.mxu0 %v695
    %v772 = vpop.f32.mrf.mxu0
    %v773 = vadd.f32 %v101, %v772
    %v774 = vpop.f32.mrf.mxu0
    %775 = vdwg.mxu0
    %v776 = vsel %vm379, %v768, -inf
    %777 = vmax.xlane.f32.xlu0 %v776
    %v778 = vpop.xlane.xlu0 %777
    %v779 = vsel %vm379, %v773, -inf
    %780 = vmax.xlane.f32.xlu0 %v779
    %v781 = vpop.xlane.xlu0 %780
    %v782 = vsub.f32 %v768, %v778
    %v783 = vsub.f32 %v773, %v781
    %v784 = vmul.f32 %v782, 1.442695
    %v785 = vpow.pop %v784
    %v786 = vmul.f32 %v783, 1.442695
    %v787 = vpow.pop %v786
    %v788 = vsel %vm379, %v785, 0.0
    %789 = vadd.xlane.f32.xlu0 %v788
    %v790 = vpop.xlane.xlu0 %789
    %v791 = vsel %vm379, %v787, 0.0
    %792 = vadd.xlane.f32.xlu0 %v791
    %v793 = vpop.xlane.xlu0 %792
    %v794 = vrcp.pop %v790
    %v795 = vrcp.pop %v793
    %796 = vrot.lane.b32.xlu0 %v281, 112
    %v797 = vpop.permute.xlu0 %796
    %798 = vrot.lane.b32.xlu0 %v286, 112
    %v799 = vpop.permute.xlu0 %798
    %v803 = vsel %vm379, %v785, 0
    %v806 = vsel %vm379, %v787, 0
    %808 = vmatprep.subr.mxu0 0.0
    %809 = vmatpush1.msra.mxu0 0.0
    %810 = vmatprep.subr.mxu0 0.0
    %811 = vmatpush1.msra.mxu0 0.0
    %812 = vmatprep.subr.mxu0 0.0
    %813 = vmatpush1.msra.mxu0 0.0
    %814 = vmatprep.subr.mxu0 0.0
    %815 = vmatpush1.msra.mxu0 0.0
    %816 = vmatprep.subr.mxu0 0.0
    %817 = vmatpush1.msra.mxu0 0.0
    %818 = vmatprep.subr.mxu0 0.0
    %819 = vmatpush1.msra.mxu0 0.0
    %820 = vmatprep.subr.mxu0 0.0
    %821 = vmatpush1.msra.mxu0 0.0
    %822 = vmatprep.subr.mxu0 0.0
    %823 = vmatpush1.msra.mxu0 0.0
    %824 = vmatprep.subr.mxu0 0.0
    %825 = vmatpush1.msra.mxu0 0.0
    %826 = vmatprep.subr.mxu0 0.0
    %827 = vmatpush1.msra.mxu0 0.0
    %828 = vmatprep.subr.mxu0 0.0
    %829 = vmatpush1.msra.mxu0 0.0
    %830 = vmatprep.subr.mxu0 0.0
    %831 = vmatpush1.msra.mxu0 0.0
    %832 = vmatprep.subr.mxu0 0.0
    %833 = vmatpush1.msra.mxu0 0.0
    %834 = vmatprep.subr.mxu0 0.0
    %835 = vmatpush1.msra.mxu0 0.0
    %836 = vmatprep.subr.mxu0 0.0
    %837 = vmatpush1.msra.mxu0 %v799
    %838 = vmatprep.subr.mxu0 0.0
    %839 = vmatpush1.msra.mxu0 %v797
    %840 = vmatprep.subr.mxu0 0.0
    %841 = vmatpush2.msra.mxu0 0.0
    %842 = vmatprep.subr.mxu0 0.0
    %843 = vmatpush2.msra.mxu0 0.0
    %844 = vmatprep.subr.mxu0 0.0
    %845 = vmatpush2.msra.mxu0 0.0
    %846 = vmatprep.subr.mxu0 0.0
    %847 = vmatpush2.msra.mxu0 0.0
    %848 = vmatprep.subr.mxu0 0.0
    %849 = vmatpush2.msra.mxu0 0.0
    %850 = vmatprep.subr.mxu0 0.0
    %851 = vmatpush2.msra.mxu0 0.0
    %852 = vmatprep.subr.mxu0 0.0
    %853 = vmatpush2.msra.mxu0 0.0
    %854 = vmatprep.subr.mxu0 0.0
    %855 = vmatpush2.msra.mxu0 0.0
    %856 = vmatprep.subr.mxu0 0.0
    %857 = vmatpush2.msra.mxu0 0.0
    %858 = vmatprep.subr.mxu0 0.0
    %859 = vmatpush2.msra.mxu0 0.0
    %860 = vmatprep.subr.mxu0 0.0
    %861 = vmatpush2.msra.mxu0 0.0
    %862 = vmatprep.subr.mxu0 0.0
    %863 = vmatpush2.msra.mxu0 0.0
    %864 = vmatprep.subr.mxu0 0.0
    %865 = vmatpush2.msra.mxu0 0.0
    %866 = vmatprep.subr.mxu0 0.0
    %867 = vmatpush2.msra.mxu0 0.0
    %868 = vmatprep.subr.mxu0 0.0
    %869 = vmatpush2.msra.mxu0 0.0
    %870 = vmatprep.subr.mxu0 0.0
    %871 = vmatpush2.msra.mxu0 0.0
    %872 = vmatprep.mubr.f32.mxu0 0.0
    %873 = vmatmul.mubr.f32.gmra.mxu0 %v803
    %v874 = vpop.f32.mrf.mxu0
    %v875 = vadd.f32 0.0, %v874
    %v876 = vpop.f32.mrf.mxu0
    %877 = vmatprep.mubr.f32.mxu0 0.0
    %878 = vmatmul.mubr.f32.gmra.mxu0 %v806
    %v879 = vpop.f32.mrf.mxu0
    %v880 = vadd.f32 0.0, %v879
    %v881 = vpop.f32.mrf.mxu0
    %882 = vdwg.mxu0
    %v883 = vmul.f32 %v875, %v794
    %v884 = vmul.f32 %v880, %v795
    %885 = vrot.lane.b32.xlu0 %v180, 104
    %v886 = vpop.permute.xlu0 %885
    %887 = vrot.lane.b32.xlu0 %v185, 104
    %v888 = vpop.permute.xlu0 %887
    %889 = vrot.lane.b32.xlu0 %v180, 72
    %v890 = vpop.permute.xlu0 %889
    %891 = vrot.lane.b32.xlu0 %v185, 72
    %v892 = vpop.permute.xlu0 %891
    %v893 = vsel %vm295, %v886, 0
    %v895 = vsel %vm295, %v888, 0
    %v897 = vsel %vm295, %v890, 0
    %v899 = vsel %vm295, %v892, 0
    %901 = vmatprep.subr.mxu0 0.0
    %902 = vmatpush1.xpose.msra.mxu0 0.0
    %903 = vmatprep.subr.mxu0 0.0
    %904 = vmatpush1.xpose.msra.mxu0 0.0
    %905 = vmatprep.subr.mxu0 0.0
    %906 = vmatpush1.xpose.msra.mxu0 0.0
    %907 = vmatprep.subr.mxu0 0.0
    %908 = vmatpush1.xpose.msra.mxu0 0.0
    %909 = vmatprep.subr.mxu0 0.0
    %910 = vmatpush1.xpose.msra.mxu0 0.0
    %911 = vmatprep.subr.mxu0 0.0
    %912 = vmatpush1.xpose.msra.mxu0 0.0
    %913 = vmatprep.subr.mxu0 0.0
    %914 = vmatpush1.xpose.msra.mxu0 0.0
    %915 = vmatprep.subr.mxu0 0.0
    %916 = vmatpush1.xpose.msra.mxu0 0.0
    %917 = vmatprep.subr.mxu0 0.0
    %918 = vmatpush1.xpose.msra.mxu0 0.0
    %919 = vmatprep.subr.mxu0 0.0
    %920 = vmatpush1.xpose.msra.mxu0 0.0
    %921 = vmatprep.subr.mxu0 0.0
    %922 = vmatpush1.xpose.msra.mxu0 0.0
    %923 = vmatprep.subr.mxu0 0.0
    %924 = vmatpush1.xpose.msra.mxu0 0.0
    %925 = vmatprep.subr.mxu0 0.0
    %926 = vmatpush1.xpose.msra.mxu0 0.0
    %927 = vmatprep.subr.mxu0 0.0
    %928 = vmatpush1.xpose.msra.mxu0 0.0
    %929 = vmatprep.subr.mxu0 0.0
    %930 = vmatpush1.xpose.msra.mxu0 %v899
    %931 = vmatprep.subr.mxu0 0.0
    %932 = vmatpush1.xpose.msra.mxu0 %v897
    %933 = vmatprep.subr.mxu0 0.0
    %934 = vmatpush2.xpose.msra.mxu0 0.0
    %935 = vmatprep.subr.mxu0 0.0
    %936 = vmatpush2.xpose.msra.mxu0 0.0
    %937 = vmatprep.subr.mxu0 0.0
    %938 = vmatpush2.xpose.msra.mxu0 0.0
    %939 = vmatprep.subr.mxu0 0.0
    %940 = vmatpush2.xpose.msra.mxu0 0.0
    %941 = vmatprep.subr.mxu0 0.0
    %942 = vmatpush2.xpose.msra.mxu0 0.0
    %943 = vmatprep.subr.mxu0 0.0
    %944 = vmatpush2.xpose.msra.mxu0 0.0
    %945 = vmatprep.subr.mxu0 0.0
    %946 = vmatpush2.xpose.msra.mxu0 0.0
    %947 = vmatprep.subr.mxu0 0.0
    %948 = vmatpush2.xpose.msra.mxu0 0.0
    %949 = vmatprep.subr.mxu0 0.0
    %950 = vmatpush2.xpose.msra.mxu0 0.0
    %951 = vmatprep.subr.mxu0 0.0
    %952 = vmatpush2.xpose.msra.mxu0 0.0
    %953 = vmatprep.subr.mxu0 0.0
    %954 = vmatpush2.xpose.msra.mxu0 0.0
    %955 = vmatprep.subr.mxu0 0.0
    %956 = vmatpush2.xpose.msra.mxu0 0.0
    %957 = vmatprep.subr.mxu0 0.0
    %958 = vmatpush2.xpose.msra.mxu0 0.0
    %959 = vmatprep.subr.mxu0 0.0
    %960 = vmatpush2.xpose.msra.mxu0 0.0
    %961 = vmatprep.subr.mxu0 0.0
    %962 = vmatpush2.xpose.msra.mxu0 0.0
    %963 = vmatprep.subr.mxu0 0.0
    %964 = vmatpush2.xpose.msra.mxu0 0.0
    %965 = vmatprep.mubr.f32.mxu0 0.0
    %966 = vmatmul.mubr.f32.gmra.mxu0 %v893
    %v967 = vpop.f32.mrf.mxu0
    %v968 = vadd.f32 %v100, %v967
    %v969 = vpop.f32.mrf.mxu0
    %970 = vmatprep.mubr.f32.mxu0 0.0
    %971 = vmatmul.mubr.f32.gmra.mxu0 %v895
    %v972 = vpop.f32.mrf.mxu0
    %v973 = vadd.f32 %v101, %v972
    %v974 = vpop.f32.mrf.mxu0
    %975 = vdwg.mxu0
    %v976 = vsel %vm379, %v968, -inf
    %977 = vmax.xlane.f32.xlu0 %v976
    %v978 = vpop.xlane.xlu0 %977
    %v979 = vsel %vm379, %v973, -inf
    %980 = vmax.xlane.f32.xlu0 %v979
    %v981 = vpop.xlane.xlu0 %980
    %v982 = vsub.f32 %v968, %v978
    %v983 = vsub.f32 %v973, %v981
    %v984 = vmul.f32 %v982, 1.442695
    %v985 = vpow.pop %v984
    %v986 = vmul.f32 %v983, 1.442695
    %v987 = vpow.pop %v986
    %v988 = vsel %vm379, %v985, 0.0
    %989 = vadd.xlane.f32.xlu0 %v988
    %v990 = vpop.xlane.xlu0 %989
    %v991 = vsel %vm379, %v987, 0.0
    %992 = vadd.xlane.f32.xlu0 %v991
    %v993 = vpop.xlane.xlu0 %992
    %v994 = vrcp.pop %v990
    %v995 = vrcp.pop %v993
    %996 = vrot.lane.b32.xlu0 %v281, 104
    %v997 = vpop.permute.xlu0 %996
    %998 = vrot.lane.b32.xlu0 %v286, 104
    %v999 = vpop.permute.xlu0 %998
    %v1003 = vsel %vm379, %v985, 0
    %v1006 = vsel %vm379, %v987, 0
    %1008 = vmatprep.subr.mxu0 0.0
    %1009 = vmatpush1.msra.mxu0 0.0
    %1010 = vmatprep.subr.mxu0 0.0
    %1011 = vmatpush1.msra.mxu0 0.0
    %1012 = vmatprep.subr.mxu0 0.0
    %1013 = vmatpush1.msra.mxu0 0.0
    %1014 = vmatprep.subr.mxu0 0.0
    %1015 = vmatpush1.msra.mxu0 0.0
    %1016 = vmatprep.subr.mxu0 0.0
    %1017 = vmatpush1.msra.mxu0 0.0
    %1018 = vmatprep.subr.mxu0 0.0
    %1019 = vmatpush1.msra.mxu0 0.0
    %1020 = vmatprep.subr.mxu0 0.0
    %1021 = vmatpush1.msra.mxu0 0.0
    %1022 = vmatprep.subr.mxu0 0.0
    %1023 = vmatpush1.msra.mxu0 0.0
    %1024 = vmatprep.subr.mxu0 0.0
    %1025 = vmatpush1.msra.mxu0 0.0
    %1026 = vmatprep.subr.mxu0 0.0
    %1027 = vmatpush1.msra.mxu0 0.0
    %1028 = vmatprep.subr.mxu0 0.0
    %1029 = vmatpush1.msra.mxu0 0.0
    %1030 = vmatprep.subr.mxu0 0.0
    %1031 = vmatpush1.msra.mxu0 0.0
    %1032 = vmatprep.subr.mxu0 0.0
    %1033 = vmatpush1.msra.mxu0 0.0
    %1034 = vmatprep.subr.mxu0 0.0
    %1035 = vmatpush1.msra.mxu0 0.0
    %1036 = vmatprep.subr.mxu0 0.0
    %1037 = vmatpush1.msra.mxu0 %v999
    %1038 = vmatprep.subr.mxu0 0.0
    %1039 = vmatpush1.msra.mxu0 %v997
    %1040 = vmatprep.subr.mxu0 0.0
    %1041 = vmatpush2.msra.mxu0 0.0
    %1042 = vmatprep.subr.mxu0 0.0
    %1043 = vmatpush2.msra.mxu0 0.0
    %1044 = vmatprep.subr.mxu0 0.0
    %1045 = vmatpush2.msra.mxu0 0.0
    %1046 = vmatprep.subr.mxu0 0.0
    %1047 = vmatpush2.msra.mxu0 0.0
    %1048 = vmatprep.subr.mxu0 0.0
    %1049 = vmatpush2.msra.mxu0 0.0
    %1050 = vmatprep.subr.mxu0 0.0
    %1051 = vmatpush2.msra.mxu0 0.0
    %1052 = vmatprep.subr.mxu0 0.0
    %1053 = vmatpush2.msra.mxu0 0.0
    %1054 = vmatprep.subr.mxu0 0.0
    %1055 = vmatpush2.msra.mxu0 0.0
    %1056 = vmatprep.subr.mxu0 0.0
    %1057 = vmatpush2.msra.mxu0 0.0
    %1058 = vmatprep.subr.mxu0 0.0
    %1059 = vmatpush2.msra.mxu0 0.0
    %1060 = vmatprep.subr.mxu0 0.0
    %1061 = vmatpush2.msra.mxu0 0.0
    %1062 = vmatprep.subr.mxu0 0.0
    %1063 = vmatpush2.msra.mxu0 0.0
    %1064 = vmatprep.subr.mxu0 0.0
    %1065 = vmatpush2.msra.mxu0 0.0
    %1066 = vmatprep.subr.mxu0 0.0
    %1067 = vmatpush2.msra.mxu0 0.0
    %1068 = vmatprep.subr.mxu0 0.0
    %1069 = vmatpush2.msra.mxu0 0.0
    %1070 = vmatprep.subr.mxu0 0.0
    %1071 = vmatpush2.msra.mxu0 0.0
    %1072 = vmatprep.mubr.f32.mxu0 0.0
    %1073 = vmatmul.mubr.f32.gmra.mxu0 %v1003
    %v1074 = vpop.f32.mrf.mxu0
    %v1075 = vadd.f32 0.0, %v1074
    %v1076 = vpop.f32.mrf.mxu0
    %1077 = vmatprep.mubr.f32.mxu0 0.0
    %1078 = vmatmul.mubr.f32.gmra.mxu0 %v1006
    %v1079 = vpop.f32.mrf.mxu0
    %v1080 = vadd.f32 0.0, %v1079
    %v1081 = vpop.f32.mrf.mxu0
    %1082 = vdwg.mxu0
    %v1083 = vmul.f32 %v1075, %v994
    %v1084 = vmul.f32 %v1080, %v995
    %1087 = vrot.lane.b32.xlu0 %v683, 8
    %v1088 = vpop.permute.xlu0 %1087
    %1089 = vrot.lane.b32.xlu0 %v684, 8
    %v1090 = vpop.permute.xlu0 %1089
    %1095 = vrot.lane.b32.xlu0 %v883, 16
    %v1096 = vpop.permute.xlu0 %1095
    %1097 = vrot.lane.b32.xlu0 %v884, 16
    %v1098 = vpop.permute.xlu0 %1097
    %1103 = vrot.lane.b32.xlu0 %v1083, 24
    %v1104 = vpop.permute.xlu0 %1103
    %1105 = vrot.lane.b32.xlu0 %v1084, 24
    %v1106 = vpop.permute.xlu0 %1105
    %v1109 = vsel %vm295, %v481, %v1088
    %v1110 = vsel %vm295, %v482, %v1090
    %v1111 = vsel %vm379, %v1109, %v1096
    %v1112 = vsel %vm379, %v1110, %v1098
    %vm1113 = vcmask 195584
    %v1114 = vsel %vm1113, %v1111, %v1104
    %v1115 = vsel %vm1113, %v1112, %v1106
    %1116 = vrot.lane.b32.xlu0 %v93, 32
    %v1117 = vpop.permute.xlu0 %1116
    %1118 = vrot.lane.b32.xlu0 %v94, 32
    %v1119 = vpop.permute.xlu0 %1118
    %1120 = vrot.lane.b32.xlu0 %v95, 32
    %v1121 = vpop.permute.xlu0 %1120
    %1122 = vrot.lane.b32.xlu0 %v96, 32
    %v1123 = vpop.permute.xlu0 %1122
    %1129 = vrot.lane.b32.xlu0 %v191, 96
    %v1130 = vpop.permute.xlu0 %1129
    %v1133 = vsel %vm106, %v1114, 0
    %v1136 = vsel %vm106, %v1115, 0
    %1138 = vmatprep.subr.mxu0 0.0
    %1139 = vmatpush1.msra.mxu0 0.0
    %1140 = vmatprep.subr.mxu0 0.0
    %1141 = vmatpush1.msra.mxu0 0.0
    %1142 = vmatprep.subr.mxu0 0.0
    %1143 = vmatpush1.msra.mxu0 0.0
    %1144 = vmatprep.subr.mxu0 0.0
    %1145 = vmatpush1.msra.mxu0 0.0
    %1146 = vmatprep.subr.mxu0 0.0
    %1147 = vmatpush1.msra.mxu0 0.0
    %1148 = vmatprep.subr.mxu0 0.0
    %1149 = vmatpush1.msra.mxu0 0.0
    %1150 = vmatprep.subr.mxu0 0.0
    %1151 = vmatpush1.msra.mxu0 0.0
    %1152 = vmatprep.subr.mxu0 0.0
    %1153 = vmatpush1.msra.mxu0 0.0
    %1154 = vmatprep.subr.mxu0 0.0
    %1155 = vmatpush1.msra.mxu0 0.0
    %1156 = vmatprep.subr.mxu0 0.0
    %1157 = vmatpush1.msra.mxu0 0.0
    %1158 = vmatprep.subr.mxu0 0.0
    %1159 = vmatpush1.msra.mxu0 0.0
    %1160 = vmatprep.subr.mxu0 0.0
    %1161 = vmatpush1.msra.mxu0 0.0
    %1162 = vmatprep.subr.mxu0 0.0
    %1163 = vmatpush1.msra.mxu0 %v1123
    %1164 = vmatprep.subr.mxu0 0.0
    %1165 = vmatpush1.msra.mxu0 %v1121
    %1166 = vmatprep.subr.mxu0 0.0
    %1167 = vmatpush1.msra.mxu0 %v1119
    %1168 = vmatprep.subr.mxu0 0.0
    %1169 = vmatpush1.msra.mxu0 %v1117
    %1170 = vmatprep.subr.mxu0 0.0
    %1171 = vmatpush2.msra.mxu0 0.0
    %1172 = vmatprep.subr.mxu0 0.0
    %1173 = vmatpush2.msra.mxu0 0.0
    %1174 = vmatprep.subr.mxu0 0.0
    %1175 = vmatpush2.msra.mxu0 0.0
    %1176 = vmatprep.subr.mxu0 0.0
    %1177 = vmatpush2.msra.mxu0 0.0
    %1178 = vmatprep.subr.mxu0 0.0
    %1179 = vmatpush2.msra.mxu0 0.0
    %1180 = vmatprep.subr.mxu0 0.0
    %1181 = vmatpush2.msra.mxu0 0.0
    %1182 = vmatprep.subr.mxu0 0.0
    %1183 = vmatpush2.msra.mxu0 0.0
    %1184 = vmatprep.subr.mxu0 0.0
    %1185 = vmatpush2.msra.mxu0 0.0
    %1186 = vmatprep.subr.mxu0 0.0
    %1187 = vmatpush2.msra.mxu0 0.0
    %1188 = vmatprep.subr.mxu0 0.0
    %1189 = vmatpush2.msra.mxu0 0.0
    %1190 = vmatprep.subr.mxu0 0.0
    %1191 = vmatpush2.msra.mxu0 0.0
    %1192 = vmatprep.subr.mxu0 0.0
    %1193 = vmatpush2.msra.mxu0 0.0
    %1194 = vmatprep.subr.mxu0 0.0
    %1195 = vmatpush2.msra.mxu0 0.0
    %1196 = vmatprep.subr.mxu0 0.0
    %1197 = vmatpush2.msra.mxu0 0.0
    %1198 = vmatprep.subr.mxu0 0.0
    %1199 = vmatpush2.msra.mxu0 0.0
    %1200 = vmatprep.subr.mxu0 0.0
    %1201 = vmatpush2.msra.mxu0 0.0
    %1202 = vmatprep.mubr.f32.mxu0 0.0
    %1203 = vmatmul.mubr.f32.gmra.mxu0 %v1133
    %v1204 = vpop.f32.mrf.mxu0
    %v1205 = vadd.f32 %v1130, %v1204
    %v1206 = vpop.f32.mrf.mxu0
    %1207 = vmatprep.mubr.f32.mxu0 0.0
    %1208 = vmatmul.mubr.f32.gmra.mxu0 %v1136
    %v1209 = vpop.f32.mrf.mxu0
    %v1210 = vadd.f32 %v1130, %v1209
    %v1211 = vpop.f32.mrf.mxu0
    %1212 = vdwg.mxu0
    %v1213 = vadd.f32 %v87, %v1205
    %v1214 = vadd.f32 %v88, %v1210
    %v1215 = vsel %vm106, %v1213, 0.0
    %1216 = vadd.xlane.f32.xlu0 %v1215
    %v1217 = vpop.xlane.xlu0 %1216
    %v1218 = vsel %vm106, %v1214, 0.0
    %1219 = vadd.xlane.f32.xlu0 %v1218
    %v1220 = vpop.xlane.xlu0 %1219
    %v1221 = vrcp.pop 32.0
    %v1222 = vmul.f32 %v1217, %v1221
    %v1223 = vmul.f32 %v1220, %v1221
    %v1224 = vsub.f32 %v1213, %v1222
    %v1225 = vsub.f32 %v1214, %v1223
    %v1226 = vmul.f32 %v1224, %v1224
    %v1227 = vmul.f32 %v1225, %v1225
    %v1228 = vsel %vm106, %v1226, 0.0
    %1229 = vadd.xlane.f32.xlu0 %v1228
    %v1230 = vpop.xlane.xlu0 %1229
    %v1231 = vsel %vm106, %v1227, 0.0
    %1232 = vadd.xlane.f32.xlu0 %v1231
    %v1233 = vpop.xlane.xlu0 %1232
    %v1234 = vmul.f32 %v1230, %v1221
    %v1235 = vmul.f32 %v1233, %v1221
    %v1236 = vadd.f32 %v1234, 1e-05
    %v1237 = vadd.f32 %v1235, 1e-05
    %v1238 = vrsqrt.pop %v1236
    %v1239 = vrsqrt.pop %v1237
    %v1240 = vmul.f32 %v1224, %v1238
    %v1241 = vmul.f32 %v1225, %v1239
    %v1242 = vlaneseq
    %v1243 = vshrl.u32 %v1242, 7
    %v1244 = vsub.s32 0, %v1243
    %v1245 = vrot.slane %v99, %v1244
    %v1246 = vmul.f32 %v1240, %v1245
    %v1247 = vmul.f32 %v1241, %v1245
    %1249 = vrot.lane.b32.xlu0 %v1245, 96
    %v1250 = vpop.permute.xlu0 %1249
    %v1252 = vadd.f32 %v1246, %v1250
    %v1253 = vadd.f32 %v1247, %v1250
    %1254 = vst.msk [vmem:[#allocation11] sm:$0xff] %vm106, %v1252
    %1255 = vst.msk [vmem:[#allocation11 + $0x8] sm:$0xff] %vm106, %v1253
    // Predicated region
    $region42: #{tpu_custom_call.1} parent=1 // pred_check
      _
    $region43: #{tpu_custom_call.1} parent=1 // pred_check_branch
      %1257 = sbr.rel (0) target = $region45
    $region44: #{tpu_custom_call.1} parent=1 // pred_region
      %s1259 = ssub.s32 256, 256
      %1260 = vsyncadd [#allocation4], %s1259
      %s1261 = sshll.u32 [#allocation11], 4
      %s1262 = int_to_ptr.vmem [resolvable:$true] %s1261
      %1267 = dma.vmem_to_hbm [thread:$0]  %s1262, 256, %s5, [#allocation4], 128, 128, 8
    $region45: #{tpu_custom_call.1} parent=1 // pred_fallthru
      _
    // Predicated region
    $region46: #{tpu_custom_call.1} parent=1 // pred_check
      _
    $region47: #{tpu_custom_call.1} parent=1 // pred_check_branch
      %1269 = sbr.rel (0) target = $region49
    $region48: #{tpu_custom_call.1} parent=1 // pred_region
      %1270 = dma.done [#allocation4], 256
    $region49: #{tpu_custom_call.1} parent=1 // pred_fallthru
      _
    %1271 = vsyncpa [#allocation3], 1
    %1272 = vsyncpa [#allocation6], 1
    %1273 = vsyncpa [#allocation9], 1
    %1274 = vsyncpa [#allocation4], 1

</llo_original>
